<compile_context>
chip_gen: v5e
topology: v5e:2x2
jax: 0.10.0
libtpu: 0.0.40
codegen_flags: <defaults>
</compile_context>

<pallas_src>
import jax
import jax.numpy as jnp
from jax import lax
from jax.experimental import pallas as pl
from jax.experimental.pallas import tpu as pltpu


def lstm_mlp_kernel(x_ref,        # (B, T, I)  batch-first input
                    w_ih_ref,     # (I, 4H)    gate order [i, f, o, g]
                    w_hh_ref,     # (H, 4H)    gate order [i, f, o, g]
                    b_ref,        # (1, 4H)    b_ih + b_hh, gate order [i, f, o, g]
                    w1_ref,       # (H, D1)
                    b1_ref,       # (1, D1)
                    w2_ref,       # (D1, D2)
                    b2_ref,       # (1, D2)
                    w3_ref,       # (2, D2)    PyTorch (out, in) layout -> rows are cheap slices
                    b3_ref,       # (1, 2)
                    out_ref):     # (B, 2)
    B, T, I = x_ref.shape
    H = w_hh_ref.shape[0]
    G = 4 * H

    x = x_ref[...]
    w_ih = w_ih_ref[...]
    w_hh = w_hh_ref[...]

    # ---- hoisted input projection: gates_x[b, t, :] = x[b, t, :] @ W_ih + bias ----
    # I is tiny (default 1): pure VPU broadcast-FMAs, no MXU, and entirely off the
    # serial h_t -> h_{t+1} dependency chain.
    gates_x = b_ref[...].reshape(1, 1, G)
    for i in range(I):
        gates_x = gates_x + x[:, :, i:i + 1] * w_ih[i:i + 1, :].reshape(1, 1, G)
    # gates_x: (B, T, G)

    # ---- recurrent loop, fully unrolled (T is static and small) ----
    h = jnp.zeros((B, H), jnp.float32)
    c = jnp.zeros((B, H), jnp.float32)
    for t in range(T):
        gates = gates_x[:, t, :]                          # (B, G)
        for k in range(H):                                # VPU broadcast-FMA recurrence
            gates = gates + h[:, k:k + 1] * w_hh[k:k + 1, :]
        sig = jax.nn.sigmoid(gates[:, :3 * H])            # [i | f | o] in one contiguous slice
        g_g = jnp.tanh(gates[:, 3 * H:])                  # [g]
        i_g = sig[:, 0 * H:1 * H]
        f_g = sig[:, 1 * H:2 * H]
        o_g = sig[:, 2 * H:3 * H]
        c = f_g * c + i_g * g_g
        h = o_g * jnp.tanh(c)

    # ---- MLP head ----
    z = jnp.maximum(h, 0.0)                               # relu(r_out[:, -1, :])

    # fc1: K = H (=2) -> VPU broadcast-FMAs, no MXU
    a1 = b1_ref[...]                                      # (1, D1), broadcasts to (B, D1)
    for k in range(H):
        a1 = a1 + z[:, k:k + 1] * w1_ref[k:k + 1, :]
    z1 = jnp.maximum(a1, 0.0)                             # (B, D1)

    # fc2: K = D1 (=300) -> the one real MXU matmul
    z2 = jnp.maximum(
        jnp.dot(z1, w2_ref[...], preferred_element_type=jnp.float32) + b2_ref[...],
        0.0)                                              # (B, D2)

    # fc3: N = 2 -> two lane reductions (VPU/XLU), avoids an MXU latency bubble
    l0 = jnp.sum(z2 * w3_ref[0:1, :], axis=-1, keepdims=True) + b3_ref[:, 0:1]   # (B, 1)
    l1 = jnp.sum(z2 * w3_ref[1:2, :], axis=-1, keepdims=True) + b3_ref[:, 1:2]   # (B, 1)

    # softmax over dim=1 (2 classes), denominator reciprocal on the EUP
    m = jnp.maximum(l0, l1)
    e0 = jnp.exp(l0 - m)
    e1 = jnp.exp(l1 - m)
    inv = pl.reciprocal(e0 + e1, approx=True)
    out_ref[:, 0:1] = e0 * inv
    out_ref[:, 1:2] = e1 * inv


def init_params(key, input_size=1, hidden_size=2, dim_1=300, dim_2=50):
    """PyTorch-layout parameters (same shapes as the nn.Module)."""
    ks = jax.random.split(key, 10)

    def uni(k, shape, fan_in):
        bound = 1.0 / jnp.sqrt(jnp.float32(fan_in))
        return jax.random.uniform(k, shape, jnp.float32, -bound, bound)

    H, I = hidden_size, input_size
    return dict(
        w_ih=uni(ks[0], (4 * H, I), H),
        w_hh=uni(ks[1], (4 * H, H), H),
        b_ih=uni(ks[2], (4 * H,), H),
        b_hh=uni(ks[3], (4 * H,), H),
        w1=uni(ks[4], (dim_1, H), H),
        b1=uni(ks[5], (dim_1,), H),
        w2=uni(ks[6], (dim_2, dim_1), dim_1),
        b2=uni(ks[7], (dim_2,), dim_1),
        w3=uni(ks[8], (2, dim_2), dim_2),
        b3=uni(ks[9], (2,), dim_2),
    )


def prepare_params(params):
    """One-time conversion of PyTorch-layout params into the kernel layout.

    Done OUTSIDE the jitted forward so no transpose / reshape / bias-add XLA ops
    are launched per call. Gate blocks are permuted from PyTorch [i, f, g, o] to
    [i, f, o, g] so the kernel applies sigmoid/tanh on two contiguous slices.
    """
    H = params["w_hh"].shape[1]
    D1 = params["w1"].shape[0]
    D2 = params["w2"].shape[0]
    col_perm = jnp.concatenate([
        jnp.arange(0 * H, 1 * H),
        jnp.arange(1 * H, 2 * H),
        jnp.arange(3 * H, 4 * H),
        jnp.arange(2 * H, 3 * H),
    ])
    f32 = jnp.float32
    return dict(
        w_ih=params["w_ih"].T[:, col_perm].astype(f32),                  # (I, 4H)
        w_hh=params["w_hh"].T[:, col_perm].astype(f32),                  # (H, 4H)
        b_lstm=(params["b_ih"] + params["b_hh"])[col_perm].reshape(1, 4 * H).astype(f32),
        w1=params["w1"].T.astype(f32),                                   # (H, D1)
        b1=params["b1"].reshape(1, D1).astype(f32),
        w2=params["w2"].T.astype(f32),                                   # (D1, D2)
        b2=params["b2"].reshape(1, D2).astype(f32),
        w3=params["w3"].astype(f32),                                     # (2, D2), untransposed
        b3=params["b3"].reshape(1, 2).astype(f32),
    )


@jax.jit
def lstm_model_forward(x_btI, kp):
    """x_btI: (B, T, I) batch-first, exactly like the PyTorch module. kp: prepare_params output."""
    B, T, I = x_btI.shape
    H = kp["w_hh"].shape[0]
    D1 = kp["w1"].shape[1]
    D2 = kp["w2"].shape[1]

    args = (x_btI, kp["w_ih"], kp["w_hh"], kp["b_lstm"],
            kp["w1"], kp["b1"], kp["w2"], kp["b2"], kp["w3"], kp["b3"])

    flops = 2 * B * (T * (I + H) * 4 * H + H * D1 + D1 * D2 + D2 * 2)
    transcendentals = B * (T * (4 * H + H) + 3)
    bytes_accessed = 4 * (sum(int(a.size) for a in args) + B * 2)
    cost = pl.CostEstimate(flops=int(flops),
                           transcendentals=int(transcendentals),
                           bytes_accessed=int(bytes_accessed))

    vmem = pl.BlockSpec(memory_space=pltpu.MemorySpace.VMEM)
    return pl.pallas_call(
        lstm_mlp_kernel,
        out_shape=jax.ShapeDtypeStruct((B, 2), jnp.float32),
        in_specs=[vmem] * len(args),
        out_specs=vmem,
        cost_estimate=cost,
    )(*args)


def reference_forward(x_btI, params):
    """Pure-JAX reference mirroring the PyTorch forward (original param layout)."""
    B, T, I = x_btI.shape
    H = params["w_hh"].shape[1]
    w_ih_T = params["w_ih"].T
    w_hh_T = params["w_hh"].T
    b = params["b_ih"] + params["b_hh"]

    def step(carry, x_t):
        h, c = carry
        gates = x_t @ w_ih_T + h @ w_hh_T + b
        i_g = jax.nn.sigmoid(gates[:, 0 * H:1 * H])
        f_g = jax.nn.sigmoid(gates[:, 1 * H:2 * H])
        g_g = jnp.tanh(gates[:, 2 * H:3 * H])
        o_g = jax.nn.sigmoid(gates[:, 3 * H:4 * H])
        c = f_g * c + i_g * g_g
        h = o_g * jnp.tanh(c)
        return (h, c), None

    h0 = jnp.zeros((B, H), jnp.float32)
    c0 = jnp.zeros((B, H), jnp.float32)
    (h, _), _ = lax.scan(step, (h0, c0), jnp.transpose(x_btI, (1, 0, 2)))

    z = jax.nn.relu(h)
    z = jax.nn.relu(z @ params["w1"].T + params["b1"])
    z = jax.nn.relu(z @ params["w2"].T + params["b2"])
    logits = z @ params["w3"].T + params["b3"]
    return jax.nn.softmax(logits, axis=1)


if __name__ == "__main__":
    key = jax.random.PRNGKey(0)
    k_x, k_p = jax.random.split(key)

    B, T, I = 4, 8, 1          # batch, seq_len, input_size (module default input_size_=1)
    x = jax.random.normal(k_x, (B, T, I), jnp.float32)
    params = init_params(k_p, input_size=I, hidden_size=2, dim_1=300, dim_2=50)
    kparams = prepare_params(params)   # one-time layout prep, not per forward call

    out = jax.block_until_ready(lstm_model_forward(x, kparams))
    ref = reference_forward(x, params)

    assert out.shape == (B, 2)
    # slightly relaxed tolerance: pl.reciprocal(approx=True) in the softmax denominator
    assert jnp.allclose(out, ref, atol=2e-3, rtol=2e-3), (out, ref)
    print("KERNEL_OK")
</pallas_src>

<mosaic_0001>
module attributes {stable_mosaic.version = 11 : i64} {
  func.func @lstm_mlp_kernel(%arg0: memref<4x8x1xf32, #tpu.memory_space<vmem>>, %arg1: memref<1x8xf32, #tpu.memory_space<vmem>>, %arg2: memref<2x8xf32, #tpu.memory_space<vmem>>, %arg3: memref<1x8xf32, #tpu.memory_space<vmem>>, %arg4: memref<2x300xf32, #tpu.memory_space<vmem>>, %arg5: memref<1x300xf32, #tpu.memory_space<vmem>>, %arg6: memref<300x50xf32, #tpu.memory_space<vmem>>, %arg7: memref<1x50xf32, #tpu.memory_space<vmem>>, %arg8: memref<2x50xf32, #tpu.memory_space<vmem>>, %arg9: memref<1x2xf32, #tpu.memory_space<vmem>>, %arg10: memref<4x2xf32, #tpu.memory_space<vmem>>) attributes {dimension_semantics = [], scalar_prefetch = 0 : i64, scratch_operands = 0 : i64, tpu.core_type = #tpu.core_type<tc>} {
    %c0 = arith.constant 0 : index
    %c0_0 = arith.constant 0 : index
    %c0_1 = arith.constant 0 : index
    %0 = vector.load %arg0[%c0, %c0_0, %c0_1] : memref<4x8x1xf32, #tpu.memory_space<vmem>>, vector<4x8x1xf32>
    %c0_2 = arith.constant 0 : index
    %c0_3 = arith.constant 0 : index
    %1 = vector.load %arg1[%c0_2, %c0_3] : memref<1x8xf32, #tpu.memory_space<vmem>>, vector<1x8xf32>
    %c0_4 = arith.constant 0 : index
    %c0_5 = arith.constant 0 : index
    %2 = vector.load %arg2[%c0_4, %c0_5] : memref<2x8xf32, #tpu.memory_space<vmem>>, vector<2x8xf32>
    %c0_6 = arith.constant 0 : index
    %c0_7 = arith.constant 0 : index
    %3 = vector.load %arg3[%c0_6, %c0_7] : memref<1x8xf32, #tpu.memory_space<vmem>>, vector<1x8xf32>
    %4 = vector.shape_cast %3 : vector<1x8xf32> to vector<1x1x8xf32>
    %5 = vector.shape_cast %1 : vector<1x8xf32> to vector<1x1x8xf32>
    %6 = vector.broadcast %0 : vector<4x8x1xf32> to vector<4x8x8xf32>
    %7 = vector.broadcast %5 : vector<1x1x8xf32> to vector<4x8x8xf32>
    %8 = arith.mulf %6, %7 : vector<4x8x8xf32>
    %9 = vector.broadcast %4 : vector<1x1x8xf32> to vector<4x8x8xf32>
    %10 = arith.addf %9, %8 : vector<4x8x8xf32>
    %cst = arith.constant 0.000000e+00 : f32
    %11 = vector.broadcast %cst : f32 to vector<4x2xf32>
    %cst_8 = arith.constant 0.000000e+00 : f32
    %12 = vector.broadcast %cst_8 : f32 to vector<4x2xf32>
    %13 = vector.extract_strided_slice %10 {offsets = [0, 0, 0], sizes = [4, 1, 8], strides = [1, 1, 1]} : vector<4x8x8xf32> to vector<4x1x8xf32>
    %14 = vector.shape_cast %13 : vector<4x1x8xf32> to vector<4x8xf32>
    %15 = vector.extract_strided_slice %11 {offsets = [0, 0], sizes = [4, 1], strides = [1, 1]} : vector<4x2xf32> to vector<4x1xf32>
    %16 = vector.extract_strided_slice %2 {offsets = [0, 0], sizes = [1, 8], strides = [1, 1]} : vector<2x8xf32> to vector<1x8xf32>
    %17 = vector.broadcast %15 : vector<4x1xf32> to vector<4x8xf32>
    %18 = vector.broadcast %16 : vector<1x8xf32> to vector<4x8xf32>
    %19 = arith.mulf %17, %18 : vector<4x8xf32>
    %20 = arith.addf %14, %19 : vector<4x8xf32>
    %21 = vector.extract_strided_slice %11 {offsets = [0, 1], sizes = [4, 1], strides = [1, 1]} : vector<4x2xf32> to vector<4x1xf32>
    %22 = vector.extract_strided_slice %2 {offsets = [1, 0], sizes = [1, 8], strides = [1, 1]} : vector<2x8xf32> to vector<1x8xf32>
    %23 = vector.broadcast %21 : vector<4x1xf32> to vector<4x8xf32>
    %24 = vector.broadcast %22 : vector<1x8xf32> to vector<4x8xf32>
    %25 = arith.mulf %23, %24 : vector<4x8xf32>
    %26 = arith.addf %20, %25 : vector<4x8xf32>
    %27 = vector.extract_strided_slice %26 {offsets = [0, 0], sizes = [4, 6], strides = [1, 1]} : vector<4x8xf32> to vector<4x6xf32>
    %28 = arith.negf %27 : vector<4x6xf32>
    %29 = math.exp %28 : vector<4x6xf32>
    %cst_9 = arith.constant 1.000000e+00 : f32
    %30 = vector.broadcast %cst_9 : f32 to vector<4x6xf32>
    %31 = arith.addf %30, %29 : vector<4x6xf32>
    %32 = arith.divf %30, %31 : vector<4x6xf32>
    %33 = vector.extract_strided_slice %26 {offsets = [0, 6], sizes = [4, 2], strides = [1, 1]} : vector<4x8xf32> to vector<4x2xf32>
    %34 = math.tanh %33 : vector<4x2xf32>
    %35 = vector.extract_strided_slice %32 {offsets = [0, 0], sizes = [4, 2], strides = [1, 1]} : vector<4x6xf32> to vector<4x2xf32>
    %36 = vector.extract_strided_slice %32 {offsets = [0, 2], sizes = [4, 2], strides = [1, 1]} : vector<4x6xf32> to vector<4x2xf32>
    %37 = vector.extract_strided_slice %32 {offsets = [0, 4], sizes = [4, 2], strides = [1, 1]} : vector<4x6xf32> to vector<4x2xf32>
    %38 = arith.mulf %36, %12 : vector<4x2xf32>
    %39 = arith.mulf %35, %34 : vector<4x2xf32>
    %40 = arith.addf %38, %39 : vector<4x2xf32>
    %41 = math.tanh %40 : vector<4x2xf32>
    %42 = arith.mulf %37, %41 : vector<4x2xf32>
    %43 = vector.extract_strided_slice %10 {offsets = [0, 1, 0], sizes = [4, 1, 8], strides = [1, 1, 1]} : vector<4x8x8xf32> to vector<4x1x8xf32>
    %44 = vector.shape_cast %43 : vector<4x1x8xf32> to vector<4x8xf32>
    %45 = vector.extract_strided_slice %42 {offsets = [0, 0], sizes = [4, 1], strides = [1, 1]} : vector<4x2xf32> to vector<4x1xf32>
    %46 = vector.extract_strided_slice %2 {offsets = [0, 0], sizes = [1, 8], strides = [1, 1]} : vector<2x8xf32> to vector<1x8xf32>
    %47 = vector.broadcast %45 : vector<4x1xf32> to vector<4x8xf32>
    %48 = vector.broadcast %46 : vector<1x8xf32> to vector<4x8xf32>
    %49 = arith.mulf %47, %48 : vector<4x8xf32>
    %50 = arith.addf %44, %49 : vector<4x8xf32>
    %51 = vector.extract_strided_slice %42 {offsets = [0, 1], sizes = [4, 1], strides = [1, 1]} : vector<4x2xf32> to vector<4x1xf32>
    %52 = vector.extract_strided_slice %2 {offsets = [1, 0], sizes = [1, 8], strides = [1, 1]} : vector<2x8xf32> to vector<1x8xf32>
    %53 = vector.broadcast %51 : vector<4x1xf32> to vector<4x8xf32>
    %54 = vector.broadcast %52 : vector<1x8xf32> to vector<4x8xf32>
    %55 = arith.mulf %53, %54 : vector<4x8xf32>
    %56 = arith.addf %50, %55 : vector<4x8xf32>
    %57 = vector.extract_strided_slice %56 {offsets = [0, 0], sizes = [4, 6], strides = [1, 1]} : vector<4x8xf32> to vector<4x6xf32>
    %58 = arith.negf %57 : vector<4x6xf32>
    %59 = math.exp %58 : vector<4x6xf32>
    %cst_10 = arith.constant 1.000000e+00 : f32
    %60 = vector.broadcast %cst_10 : f32 to vector<4x6xf32>
    %61 = arith.addf %60, %59 : vector<4x6xf32>
    %62 = arith.divf %60, %61 : vector<4x6xf32>
    %63 = vector.extract_strided_slice %56 {offsets = [0, 6], sizes = [4, 2], strides = [1, 1]} : vector<4x8xf32> to vector<4x2xf32>
    %64 = math.tanh %63 : vector<4x2xf32>
    %65 = vector.extract_strided_slice %62 {offsets = [0, 0], sizes = [4, 2], strides = [1, 1]} : vector<4x6xf32> to vector<4x2xf32>
    %66 = vector.extract_strided_slice %62 {offsets = [0, 2], sizes = [4, 2], strides = [1, 1]} : vector<4x6xf32> to vector<4x2xf32>
    %67 = vector.extract_strided_slice %62 {offsets = [0, 4], sizes = [4, 2], strides = [1, 1]} : vector<4x6xf32> to vector<4x2xf32>
    %68 = arith.mulf %66, %40 : vector<4x2xf32>
    %69 = arith.mulf %65, %64 : vector<4x2xf32>
    %70 = arith.addf %68, %69 : vector<4x2xf32>
    %71 = math.tanh %70 : vector<4x2xf32>
    %72 = arith.mulf %67, %71 : vector<4x2xf32>
    %73 = vector.extract_strided_slice %10 {offsets = [0, 2, 0], sizes = [4, 1, 8], strides = [1, 1, 1]} : vector<4x8x8xf32> to vector<4x1x8xf32>
    %74 = vector.shape_cast %73 : vector<4x1x8xf32> to vector<4x8xf32>
    %75 = vector.extract_strided_slice %72 {offsets = [0, 0], sizes = [4, 1], strides = [1, 1]} : vector<4x2xf32> to vector<4x1xf32>
    %76 = vector.extract_strided_slice %2 {offsets = [0, 0], sizes = [1, 8], strides = [1, 1]} : vector<2x8xf32> to vector<1x8xf32>
    %77 = vector.broadcast %75 : vector<4x1xf32> to vector<4x8xf32>
    %78 = vector.broadcast %76 : vector<1x8xf32> to vector<4x8xf32>
    %79 = arith.mulf %77, %78 : vector<4x8xf32>
    %80 = arith.addf %74, %79 : vector<4x8xf32>
    %81 = vector.extract_strided_slice %72 {offsets = [0, 1], sizes = [4, 1], strides = [1, 1]} : vector<4x2xf32> to vector<4x1xf32>
    %82 = vector.extract_strided_slice %2 {offsets = [1, 0], sizes = [1, 8], strides = [1, 1]} : vector<2x8xf32> to vector<1x8xf32>
    %83 = vector.broadcast %81 : vector<4x1xf32> to vector<4x8xf32>
    %84 = vector.broadcast %82 : vector<1x8xf32> to vector<4x8xf32>
    %85 = arith.mulf %83, %84 : vector<4x8xf32>
    %86 = arith.addf %80, %85 : vector<4x8xf32>
    %87 = vector.extract_strided_slice %86 {offsets = [0, 0], sizes = [4, 6], strides = [1, 1]} : vector<4x8xf32> to vector<4x6xf32>
    %88 = arith.negf %87 : vector<4x6xf32>
    %89 = math.exp %88 : vector<4x6xf32>
    %cst_11 = arith.constant 1.000000e+00 : f32
    %90 = vector.broadcast %cst_11 : f32 to vector<4x6xf32>
    %91 = arith.addf %90, %89 : vector<4x6xf32>
    %92 = arith.divf %90, %91 : vector<4x6xf32>
    %93 = vector.extract_strided_slice %86 {offsets = [0, 6], sizes = [4, 2], strides = [1, 1]} : vector<4x8xf32> to vector<4x2xf32>
    %94 = math.tanh %93 : vector<4x2xf32>
    %95 = vector.extract_strided_slice %92 {offsets = [0, 0], sizes = [4, 2], strides = [1, 1]} : vector<4x6xf32> to vector<4x2xf32>
    %96 = vector.extract_strided_slice %92 {offsets = [0, 2], sizes = [4, 2], strides = [1, 1]} : vector<4x6xf32> to vector<4x2xf32>
    %97 = vector.extract_strided_slice %92 {offsets = [0, 4], sizes = [4, 2], strides = [1, 1]} : vector<4x6xf32> to vector<4x2xf32>
    %98 = arith.mulf %96, %70 : vector<4x2xf32>
    %99 = arith.mulf %95, %94 : vector<4x2xf32>
    %100 = arith.addf %98, %99 : vector<4x2xf32>
    %101 = math.tanh %100 : vector<4x2xf32>
    %102 = arith.mulf %97, %101 : vector<4x2xf32>
    %103 = vector.extract_strided_slice %10 {offsets = [0, 3, 0], sizes = [4, 1, 8], strides = [1, 1, 1]} : vector<4x8x8xf32> to vector<4x1x8xf32>
    %104 = vector.shape_cast %103 : vector<4x1x8xf32> to vector<4x8xf32>
    %105 = vector.extract_strided_slice %102 {offsets = [0, 0], sizes = [4, 1], strides = [1, 1]} : vector<4x2xf32> to vector<4x1xf32>
    %106 = vector.extract_strided_slice %2 {offsets = [0, 0], sizes = [1, 8], strides = [1, 1]} : vector<2x8xf32> to vector<1x8xf32>
    %107 = vector.broadcast %105 : vector<4x1xf32> to vector<4x8xf32>
    %108 = vector.broadcast %106 : vector<1x8xf32> to vector<4x8xf32>
    %109 = arith.mulf %107, %108 : vector<4x8xf32>
    %110 = arith.addf %104, %109 : vector<4x8xf32>
    %111 = vector.extract_strided_slice %102 {offsets = [0, 1], sizes = [4, 1], strides = [1, 1]} : vector<4x2xf32> to vector<4x1xf32>
    %112 = vector.extract_strided_slice %2 {offsets = [1, 0], sizes = [1, 8], strides = [1, 1]} : vector<2x8xf32> to vector<1x8xf32>
    %113 = vector.broadcast %111 : vector<4x1xf32> to vector<4x8xf32>
    %114 = vector.broadcast %112 : vector<1x8xf32> to vector<4x8xf32>
    %115 = arith.mulf %113, %114 : vector<4x8xf32>
    %116 = arith.addf %110, %115 : vector<4x8xf32>
    %117 = vector.extract_strided_slice %116 {offsets = [0, 0], sizes = [4, 6], strides = [1, 1]} : vector<4x8xf32> to vector<4x6xf32>
    %118 = arith.negf %117 : vector<4x6xf32>
    %119 = math.exp %118 : vector<4x6xf32>
    %cst_12 = arith.constant 1.000000e+00 : f32
    %120 = vector.broadcast %cst_12 : f32 to vector<4x6xf32>
    %121 = arith.addf %120, %119 : vector<4x6xf32>
    %122 = arith.divf %120, %121 : vector<4x6xf32>
    %123 = vector.extract_strided_slice %116 {offsets = [0, 6], sizes = [4, 2], strides = [1, 1]} : vector<4x8xf32> to vector<4x2xf32>
    %124 = math.tanh %123 : vector<4x2xf32>
    %125 = vector.extract_strided_slice %122 {offsets = [0, 0], sizes = [4, 2], strides = [1, 1]} : vector<4x6xf32> to vector<4x2xf32>
    %126 = vector.extract_strided_slice %122 {offsets = [0, 2], sizes = [4, 2], strides = [1, 1]} : vector<4x6xf32> to vector<4x2xf32>
    %127 = vector.extract_strided_slice %122 {offsets = [0, 4], sizes = [4, 2], strides = [1, 1]} : vector<4x6xf32> to vector<4x2xf32>
    %128 = arith.mulf %126, %100 : vector<4x2xf32>
    %129 = arith.mulf %125, %124 : vector<4x2xf32>
    %130 = arith.addf %128, %129 : vector<4x2xf32>
    %131 = math.tanh %130 : vector<4x2xf32>
    %132 = arith.mulf %127, %131 : vector<4x2xf32>
    %133 = vector.extract_strided_slice %10 {offsets = [0, 4, 0], sizes = [4, 1, 8], strides = [1, 1, 1]} : vector<4x8x8xf32> to vector<4x1x8xf32>
    %134 = vector.shape_cast %133 : vector<4x1x8xf32> to vector<4x8xf32>
    %135 = vector.extract_strided_slice %132 {offsets = [0, 0], sizes = [4, 1], strides = [1, 1]} : vector<4x2xf32> to vector<4x1xf32>
    %136 = vector.extract_strided_slice %2 {offsets = [0, 0], sizes = [1, 8], strides = [1, 1]} : vector<2x8xf32> to vector<1x8xf32>
    %137 = vector.broadcast %135 : vector<4x1xf32> to vector<4x8xf32>
    %138 = vector.broadcast %136 : vector<1x8xf32> to vector<4x8xf32>
    %139 = arith.mulf %137, %138 : vector<4x8xf32>
    %140 = arith.addf %134, %139 : vector<4x8xf32>
    %141 = vector.extract_strided_slice %132 {offsets = [0, 1], sizes = [4, 1], strides = [1, 1]} : vector<4x2xf32> to vector<4x1xf32>
    %142 = vector.extract_strided_slice %2 {offsets = [1, 0], sizes = [1, 8], strides = [1, 1]} : vector<2x8xf32> to vector<1x8xf32>
    %143 = vector.broadcast %141 : vector<4x1xf32> to vector<4x8xf32>
    %144 = vector.broadcast %142 : vector<1x8xf32> to vector<4x8xf32>
    %145 = arith.mulf %143, %144 : vector<4x8xf32>
    %146 = arith.addf %140, %145 : vector<4x8xf32>
    %147 = vector.extract_strided_slice %146 {offsets = [0, 0], sizes = [4, 6], strides = [1, 1]} : vector<4x8xf32> to vector<4x6xf32>
    %148 = arith.negf %147 : vector<4x6xf32>
    %149 = math.exp %148 : vector<4x6xf32>
    %cst_13 = arith.constant 1.000000e+00 : f32
    %150 = vector.broadcast %cst_13 : f32 to vector<4x6xf32>
    %151 = arith.addf %150, %149 : vector<4x6xf32>
    %152 = arith.divf %150, %151 : vector<4x6xf32>
    %153 = vector.extract_strided_slice %146 {offsets = [0, 6], sizes = [4, 2], strides = [1, 1]} : vector<4x8xf32> to vector<4x2xf32>
    %154 = math.tanh %153 : vector<4x2xf32>
    %155 = vector.extract_strided_slice %152 {offsets = [0, 0], sizes = [4, 2], strides = [1, 1]} : vector<4x6xf32> to vector<4x2xf32>
    %156 = vector.extract_strided_slice %152 {offsets = [0, 2], sizes = [4, 2], strides = [1, 1]} : vector<4x6xf32> to vector<4x2xf32>
    %157 = vector.extract_strided_slice %152 {offsets = [0, 4], sizes = [4, 2], strides = [1, 1]} : vector<4x6xf32> to vector<4x2xf32>
    %158 = arith.mulf %156, %130 : vector<4x2xf32>
    %159 = arith.mulf %155, %154 : vector<4x2xf32>
    %160 = arith.addf %158, %159 : vector<4x2xf32>
    %161 = math.tanh %160 : vector<4x2xf32>
    %162 = arith.mulf %157, %161 : vector<4x2xf32>
    %163 = vector.extract_strided_slice %10 {offsets = [0, 5, 0], sizes = [4, 1, 8], strides = [1, 1, 1]} : vector<4x8x8xf32> to vector<4x1x8xf32>
    %164 = vector.shape_cast %163 : vector<4x1x8xf32> to vector<4x8xf32>
    %165 = vector.extract_strided_slice %162 {offsets = [0, 0], sizes = [4, 1], strides = [1, 1]} : vector<4x2xf32> to vector<4x1xf32>
    %166 = vector.extract_strided_slice %2 {offsets = [0, 0], sizes = [1, 8], strides = [1, 1]} : vector<2x8xf32> to vector<1x8xf32>
    %167 = vector.broadcast %165 : vector<4x1xf32> to vector<4x8xf32>
    %168 = vector.broadcast %166 : vector<1x8xf32> to vector<4x8xf32>
    %169 = arith.mulf %167, %168 : vector<4x8xf32>
    %170 = arith.addf %164, %169 : vector<4x8xf32>
    %171 = vector.extract_strided_slice %162 {offsets = [0, 1], sizes = [4, 1], strides = [1, 1]} : vector<4x2xf32> to vector<4x1xf32>
    %172 = vector.extract_strided_slice %2 {offsets = [1, 0], sizes = [1, 8], strides = [1, 1]} : vector<2x8xf32> to vector<1x8xf32>
    %173 = vector.broadcast %171 : vector<4x1xf32> to vector<4x8xf32>
    %174 = vector.broadcast %172 : vector<1x8xf32> to vector<4x8xf32>
    %175 = arith.mulf %173, %174 : vector<4x8xf32>
    %176 = arith.addf %170, %175 : vector<4x8xf32>
    %177 = vector.extract_strided_slice %176 {offsets = [0, 0], sizes = [4, 6], strides = [1, 1]} : vector<4x8xf32> to vector<4x6xf32>
    %178 = arith.negf %177 : vector<4x6xf32>
    %179 = math.exp %178 : vector<4x6xf32>
    %cst_14 = arith.constant 1.000000e+00 : f32
    %180 = vector.broadcast %cst_14 : f32 to vector<4x6xf32>
    %181 = arith.addf %180, %179 : vector<4x6xf32>
    %182 = arith.divf %180, %181 : vector<4x6xf32>
    %183 = vector.extract_strided_slice %176 {offsets = [0, 6], sizes = [4, 2], strides = [1, 1]} : vector<4x8xf32> to vector<4x2xf32>
    %184 = math.tanh %183 : vector<4x2xf32>
    %185 = vector.extract_strided_slice %182 {offsets = [0, 0], sizes = [4, 2], strides = [1, 1]} : vector<4x6xf32> to vector<4x2xf32>
    %186 = vector.extract_strided_slice %182 {offsets = [0, 2], sizes = [4, 2], strides = [1, 1]} : vector<4x6xf32> to vector<4x2xf32>
    %187 = vector.extract_strided_slice %182 {offsets = [0, 4], sizes = [4, 2], strides = [1, 1]} : vector<4x6xf32> to vector<4x2xf32>
    %188 = arith.mulf %186, %160 : vector<4x2xf32>
    %189 = arith.mulf %185, %184 : vector<4x2xf32>
    %190 = arith.addf %188, %189 : vector<4x2xf32>
    %191 = math.tanh %190 : vector<4x2xf32>
    %192 = arith.mulf %187, %191 : vector<4x2xf32>
    %193 = vector.extract_strided_slice %10 {offsets = [0, 6, 0], sizes = [4, 1, 8], strides = [1, 1, 1]} : vector<4x8x8xf32> to vector<4x1x8xf32>
    %194 = vector.shape_cast %193 : vector<4x1x8xf32> to vector<4x8xf32>
    %195 = vector.extract_strided_slice %192 {offsets = [0, 0], sizes = [4, 1], strides = [1, 1]} : vector<4x2xf32> to vector<4x1xf32>
    %196 = vector.extract_strided_slice %2 {offsets = [0, 0], sizes = [1, 8], strides = [1, 1]} : vector<2x8xf32> to vector<1x8xf32>
    %197 = vector.broadcast %195 : vector<4x1xf32> to vector<4x8xf32>
    %198 = vector.broadcast %196 : vector<1x8xf32> to vector<4x8xf32>
    %199 = arith.mulf %197, %198 : vector<4x8xf32>
    %200 = arith.addf %194, %199 : vector<4x8xf32>
    %201 = vector.extract_strided_slice %192 {offsets = [0, 1], sizes = [4, 1], strides = [1, 1]} : vector<4x2xf32> to vector<4x1xf32>
    %202 = vector.extract_strided_slice %2 {offsets = [1, 0], sizes = [1, 8], strides = [1, 1]} : vector<2x8xf32> to vector<1x8xf32>
    %203 = vector.broadcast %201 : vector<4x1xf32> to vector<4x8xf32>
    %204 = vector.broadcast %202 : vector<1x8xf32> to vector<4x8xf32>
    %205 = arith.mulf %203, %204 : vector<4x8xf32>
    %206 = arith.addf %200, %205 : vector<4x8xf32>
    %207 = vector.extract_strided_slice %206 {offsets = [0, 0], sizes = [4, 6], strides = [1, 1]} : vector<4x8xf32> to vector<4x6xf32>
    %208 = arith.negf %207 : vector<4x6xf32>
    %209 = math.exp %208 : vector<4x6xf32>
    %cst_15 = arith.constant 1.000000e+00 : f32
    %210 = vector.broadcast %cst_15 : f32 to vector<4x6xf32>
    %211 = arith.addf %210, %209 : vector<4x6xf32>
    %212 = arith.divf %210, %211 : vector<4x6xf32>
    %213 = vector.extract_strided_slice %206 {offsets = [0, 6], sizes = [4, 2], strides = [1, 1]} : vector<4x8xf32> to vector<4x2xf32>
    %214 = math.tanh %213 : vector<4x2xf32>
    %215 = vector.extract_strided_slice %212 {offsets = [0, 0], sizes = [4, 2], strides = [1, 1]} : vector<4x6xf32> to vector<4x2xf32>
    %216 = vector.extract_strided_slice %212 {offsets = [0, 2], sizes = [4, 2], strides = [1, 1]} : vector<4x6xf32> to vector<4x2xf32>
    %217 = vector.extract_strided_slice %212 {offsets = [0, 4], sizes = [4, 2], strides = [1, 1]} : vector<4x6xf32> to vector<4x2xf32>
    %218 = arith.mulf %216, %190 : vector<4x2xf32>
    %219 = arith.mulf %215, %214 : vector<4x2xf32>
    %220 = arith.addf %218, %219 : vector<4x2xf32>
    %221 = math.tanh %220 : vector<4x2xf32>
    %222 = arith.mulf %217, %221 : vector<4x2xf32>
    %223 = vector.extract_strided_slice %10 {offsets = [0, 7, 0], sizes = [4, 1, 8], strides = [1, 1, 1]} : vector<4x8x8xf32> to vector<4x1x8xf32>
    %224 = vector.shape_cast %223 : vector<4x1x8xf32> to vector<4x8xf32>
    %225 = vector.extract_strided_slice %222 {offsets = [0, 0], sizes = [4, 1], strides = [1, 1]} : vector<4x2xf32> to vector<4x1xf32>
    %226 = vector.extract_strided_slice %2 {offsets = [0, 0], sizes = [1, 8], strides = [1, 1]} : vector<2x8xf32> to vector<1x8xf32>
    %227 = vector.broadcast %225 : vector<4x1xf32> to vector<4x8xf32>
    %228 = vector.broadcast %226 : vector<1x8xf32> to vector<4x8xf32>
    %229 = arith.mulf %227, %228 : vector<4x8xf32>
    %230 = arith.addf %224, %229 : vector<4x8xf32>
    %231 = vector.extract_strided_slice %222 {offsets = [0, 1], sizes = [4, 1], strides = [1, 1]} : vector<4x2xf32> to vector<4x1xf32>
    %232 = vector.extract_strided_slice %2 {offsets = [1, 0], sizes = [1, 8], strides = [1, 1]} : vector<2x8xf32> to vector<1x8xf32>
    %233 = vector.broadcast %231 : vector<4x1xf32> to vector<4x8xf32>
    %234 = vector.broadcast %232 : vector<1x8xf32> to vector<4x8xf32>
    %235 = arith.mulf %233, %234 : vector<4x8xf32>
    %236 = arith.addf %230, %235 : vector<4x8xf32>
    %237 = vector.extract_strided_slice %236 {offsets = [0, 0], sizes = [4, 6], strides = [1, 1]} : vector<4x8xf32> to vector<4x6xf32>
    %238 = arith.negf %237 : vector<4x6xf32>
    %239 = math.exp %238 : vector<4x6xf32>
    %cst_16 = arith.constant 1.000000e+00 : f32
    %240 = vector.broadcast %cst_16 : f32 to vector<4x6xf32>
    %241 = arith.addf %240, %239 : vector<4x6xf32>
    %242 = arith.divf %240, %241 : vector<4x6xf32>
    %243 = vector.extract_strided_slice %236 {offsets = [0, 6], sizes = [4, 2], strides = [1, 1]} : vector<4x8xf32> to vector<4x2xf32>
    %244 = math.tanh %243 : vector<4x2xf32>
    %245 = vector.extract_strided_slice %242 {offsets = [0, 0], sizes = [4, 2], strides = [1, 1]} : vector<4x6xf32> to vector<4x2xf32>
    %246 = vector.extract_strided_slice %242 {offsets = [0, 2], sizes = [4, 2], strides = [1, 1]} : vector<4x6xf32> to vector<4x2xf32>
    %247 = vector.extract_strided_slice %242 {offsets = [0, 4], sizes = [4, 2], strides = [1, 1]} : vector<4x6xf32> to vector<4x2xf32>
    %248 = arith.mulf %246, %220 : vector<4x2xf32>
    %249 = arith.mulf %245, %244 : vector<4x2xf32>
    %250 = arith.addf %248, %249 : vector<4x2xf32>
    %251 = math.tanh %250 : vector<4x2xf32>
    %252 = arith.mulf %247, %251 : vector<4x2xf32>
    %cst_17 = arith.constant 0.000000e+00 : f32
    %253 = vector.broadcast %cst_17 : f32 to vector<4x2xf32>
    %254 = arith.maximumf %252, %253 : vector<4x2xf32>
    %c0_18 = arith.constant 0 : index
    %c0_19 = arith.constant 0 : index
    %255 = vector.load %arg5[%c0_18, %c0_19] : memref<1x300xf32, #tpu.memory_space<vmem>>, vector<1x300xf32>
    %256 = vector.extract_strided_slice %254 {offsets = [0, 0], sizes = [4, 1], strides = [1, 1]} : vector<4x2xf32> to vector<4x1xf32>
    %c0_20 = arith.constant 0 : index
    %c0_21 = arith.constant 0 : index
    %257 = vector.load %arg4[%c0_20, %c0_21] : memref<2x300xf32, #tpu.memory_space<vmem>>, vector<1x300xf32>
    %258 = vector.broadcast %256 : vector<4x1xf32> to vector<4x300xf32>
    %259 = vector.broadcast %257 : vector<1x300xf32> to vector<4x300xf32>
    %260 = arith.mulf %258, %259 : vector<4x300xf32>
    %261 = vector.broadcast %255 : vector<1x300xf32> to vector<4x300xf32>
    %262 = arith.addf %261, %260 : vector<4x300xf32>
    %263 = vector.extract_strided_slice %254 {offsets = [0, 1], sizes = [4, 1], strides = [1, 1]} : vector<4x2xf32> to vector<4x1xf32>
    %c1 = arith.constant 1 : index
    %c0_22 = arith.constant 0 : index
    %264 = vector.load %arg4[%c1, %c0_22] : memref<2x300xf32, #tpu.memory_space<vmem>>, vector<1x300xf32>
    %265 = vector.broadcast %263 : vector<4x1xf32> to vector<4x300xf32>
    %266 = vector.broadcast %264 : vector<1x300xf32> to vector<4x300xf32>
    %267 = arith.mulf %265, %266 : vector<4x300xf32>
    %268 = arith.addf %262, %267 : vector<4x300xf32>
    %cst_23 = arith.constant 0.000000e+00 : f32
    %269 = vector.broadcast %cst_23 : f32 to vector<4x300xf32>
    %270 = arith.maximumf %268, %269 : vector<4x300xf32>
    %c0_24 = arith.constant 0 : index
    %c0_25 = arith.constant 0 : index
    %271 = vector.load %arg6[%c0_24, %c0_25] : memref<300x50xf32, #tpu.memory_space<vmem>>, vector<300x50xf32>
    %cst_26 = arith.constant dense<0.000000e+00> : vector<4x50xf32>
    %272 = tpu.matmul %270, %271, %cst_26 {dimension_numbers = #tpu.dot_dimension_numbers<[1], [0], [0], [1], [0, 0, 1, 1], [], []>} : vector<4x300xf32>, vector<300x50xf32>, vector<4x50xf32> -> vector<4x50xf32>
    %c0_27 = arith.constant 0 : index
    %c0_28 = arith.constant 0 : index
    %273 = vector.load %arg7[%c0_27, %c0_28] : memref<1x50xf32, #tpu.memory_space<vmem>>, vector<1x50xf32>
    %274 = vector.broadcast %273 : vector<1x50xf32> to vector<4x50xf32>
    %275 = arith.addf %272, %274 : vector<4x50xf32>
    %cst_29 = arith.constant 0.000000e+00 : f32
    %276 = vector.broadcast %cst_29 : f32 to vector<4x50xf32>
    %277 = arith.maximumf %275, %276 : vector<4x50xf32>
    %c0_30 = arith.constant 0 : index
    %c0_31 = arith.constant 0 : index
    %278 = vector.load %arg8[%c0_30, %c0_31] : memref<2x50xf32, #tpu.memory_space<vmem>>, vector<1x50xf32>
    %279 = vector.broadcast %278 : vector<1x50xf32> to vector<4x50xf32>
    %280 = arith.mulf %277, %279 : vector<4x50xf32>
    %cst_32 = arith.constant dense<0.000000e+00> : vector<4xf32>
    %281 = vector.multi_reduction <add>, %280, %cst_32 [1] : vector<4x50xf32> to vector<4xf32>
    %282 = vector.shape_cast %281 : vector<4xf32> to vector<4x1xf32>
    %c0_33 = arith.constant 0 : index
    %c0_34 = arith.constant 0 : index
    %283 = vector.load %arg9[%c0_33, %c0_34] : memref<1x2xf32, #tpu.memory_space<vmem>>, vector<1x1xf32>
    %284 = vector.broadcast %283 : vector<1x1xf32> to vector<4x1xf32>
    %285 = arith.addf %282, %284 : vector<4x1xf32>
    %c1_35 = arith.constant 1 : index
    %c0_36 = arith.constant 0 : index
    %286 = vector.load %arg8[%c1_35, %c0_36] : memref<2x50xf32, #tpu.memory_space<vmem>>, vector<1x50xf32>
    %287 = vector.broadcast %286 : vector<1x50xf32> to vector<4x50xf32>
    %288 = arith.mulf %277, %287 : vector<4x50xf32>
    %cst_37 = arith.constant dense<0.000000e+00> : vector<4xf32>
    %289 = vector.multi_reduction <add>, %288, %cst_37 [1] : vector<4x50xf32> to vector<4xf32>
    %290 = vector.shape_cast %289 : vector<4xf32> to vector<4x1xf32>
    %c0_38 = arith.constant 0 : index
    %c1_39 = arith.constant 1 : index
    %291 = vector.load %arg9[%c0_38, %c1_39] : memref<1x2xf32, #tpu.memory_space<vmem>>, vector<1x1xf32>
    %292 = vector.broadcast %291 : vector<1x1xf32> to vector<4x1xf32>
    %293 = arith.addf %290, %292 : vector<4x1xf32>
    %294 = arith.maximumf %285, %293 : vector<4x1xf32>
    %295 = arith.subf %285, %294 : vector<4x1xf32>
    %296 = math.exp %295 : vector<4x1xf32>
    %297 = arith.subf %293, %294 : vector<4x1xf32>
    %298 = math.exp %297 : vector<4x1xf32>
    %299 = arith.addf %296, %298 : vector<4x1xf32>
    %300 = tpu.reciprocal %299 {approx = true} : vector<4x1xf32> -> vector<4x1xf32>
    %301 = arith.mulf %296, %300 : vector<4x1xf32>
    %c0_40 = arith.constant 0 : index
    %c0_41 = arith.constant 0 : index
    %302 = vector.load %arg10[%c0_40, %c0_41] : memref<4x2xf32, #tpu.memory_space<vmem>>, vector<4x1xf32>
    tpu.vector_store %arg10[%c0_40, %c0_41], %301 {strides = array<i32>} : memref<4x2xf32, #tpu.memory_space<vmem>>, vector<4x1xf32>,
    %303 = arith.mulf %298, %300 : vector<4x1xf32>
    %c0_42 = arith.constant 0 : index
    %c1_43 = arith.constant 1 : index
    %304 = vector.load %arg10[%c0_42, %c1_43] : memref<4x2xf32, #tpu.memory_space<vmem>>, vector<4x1xf32>
    tpu.vector_store %arg10[%c0_42, %c1_43], %303 {strides = array<i32>} : memref<4x2xf32, #tpu.memory_space<vmem>>, vector<4x1xf32>,
    return
  }
}

</mosaic_0001>

<llo_original>
// kernel: lstm_model_forward.1
$region0: #{lstm_model_forward.1}
  #allocation0 [shape = 'u32[]', space=smem, size = 0x4, offset = 0x4, fixed_abs, tag = 'smem constant byte address 0x4 - core index']
  #allocation1 [shape = 'u32[72,128]{1,0:T(1,128)}', space=vmem, size = 0x9000, scoped, tag = 'internal scratch']
  %s0 = inlined_call_operand.vmem [shape: f32[4,8,1], index: 0, kind: input, shape index: {}]
  %s1 = inlined_call_operand.vmem [shape: f32[1,8], index: 1, kind: input, shape index: {}]
  %s2 = inlined_call_operand.vmem [shape: f32[2,8], index: 2, kind: input, shape index: {}]
  %s3 = inlined_call_operand.vmem [shape: f32[1,8], index: 3, kind: input, shape index: {}]
  %s4 = inlined_call_operand.vmem [shape: f32[2,300], index: 4, kind: input, shape index: {}]
  %s5 = inlined_call_operand.vmem [shape: f32[1,300], index: 5, kind: input, shape index: {}]
  %s6 = inlined_call_operand.vmem [shape: f32[300,50], index: 6, kind: input, shape index: {}]
  %s7 = inlined_call_operand.vmem [shape: f32[1,50], index: 7, kind: input, shape index: {}]
  %s8 = inlined_call_operand.vmem [shape: f32[2,50], index: 8, kind: input, shape index: {}]
  %s9 = inlined_call_operand.vmem [shape: f32[1,2], index: 9, kind: input, shape index: {}]
  %s10 = inlined_call_operand.vmem [shape: f32[4,2], index: 10, kind: output, shape index: {}]
  %s11 = sld [smem:[#allocation0]]
  $region50: #{lstm_model_forward.1} parent=0
    _
  %s13 = ssub.s32 1, %s11
  %s14 = scalar_select 0, %s13, %s11
  // Predicated region
  $region2: #{lstm_model_forward.1} parent=0 // pred_check
    _
  $region3: #{lstm_model_forward.1} parent=0 // pred_check_branch
    %16 = sbr.rel (0) target = $region5
  $region4: #{lstm_model_forward.1} parent=0 // pred_region
    _
  $region5: #{lstm_model_forward.1} parent=0 // pred_fallthru
    _
  // Predicated region
  $region6: #{lstm_model_forward.1} parent=0 // pred_check
    _
  $region7: #{lstm_model_forward.1} parent=0 // pred_check_branch
    %18 = sbr.rel (0) target = $region9
  $region8: #{lstm_model_forward.1} parent=0 // pred_region
    _
  $region9: #{lstm_model_forward.1} parent=0 // pred_fallthru
    _
  // Predicated region
  $region10: #{lstm_model_forward.1} parent=0 // pred_check
    _
  $region11: #{lstm_model_forward.1} parent=0 // pred_check_branch
    %20 = sbr.rel (0) target = $region13
  $region12: #{lstm_model_forward.1} parent=0 // pred_region
    _
  $region13: #{lstm_model_forward.1} parent=0 // pred_fallthru
    _
  // Predicated region
  $region14: #{lstm_model_forward.1} parent=0 // pred_check
    _
  $region15: #{lstm_model_forward.1} parent=0 // pred_check_branch
    %22 = sbr.rel (0) target = $region17
  $region16: #{lstm_model_forward.1} parent=0 // pred_region
    _
  $region17: #{lstm_model_forward.1} parent=0 // pred_fallthru
    _
  // Predicated region
  $region18: #{lstm_model_forward.1} parent=0 // pred_check
    _
  $region19: #{lstm_model_forward.1} parent=0 // pred_check_branch
    %24 = sbr.rel (0) target = $region21
  $region20: #{lstm_model_forward.1} parent=0 // pred_region
    _
  $region21: #{lstm_model_forward.1} parent=0 // pred_fallthru
    _
  // Predicated region
  $region22: #{lstm_model_forward.1} parent=0 // pred_check
    _
  $region23: #{lstm_model_forward.1} parent=0 // pred_check_branch
    %26 = sbr.rel (0) target = $region25
  $region24: #{lstm_model_forward.1} parent=0 // pred_region
    _
  $region25: #{lstm_model_forward.1} parent=0 // pred_fallthru
    _
  // Predicated region
  $region26: #{lstm_model_forward.1} parent=0 // pred_check
    _
  $region27: #{lstm_model_forward.1} parent=0 // pred_check_branch
    %28 = sbr.rel (0) target = $region29
  $region28: #{lstm_model_forward.1} parent=0 // pred_region
    _
  $region29: #{lstm_model_forward.1} parent=0 // pred_fallthru
    _
  // Predicated region
  $region30: #{lstm_model_forward.1} parent=0 // pred_check
    _
  $region31: #{lstm_model_forward.1} parent=0 // pred_check_branch
    %30 = sbr.rel (0) target = $region33
  $region32: #{lstm_model_forward.1} parent=0 // pred_region
    _
  $region33: #{lstm_model_forward.1} parent=0 // pred_fallthru
    _
  // Predicated region
  $region34: #{lstm_model_forward.1} parent=0 // pred_check
    _
  $region35: #{lstm_model_forward.1} parent=0 // pred_check_branch
    %32 = sbr.rel (0) target = $region37
  $region36: #{lstm_model_forward.1} parent=0 // pred_region
    _
  $region37: #{lstm_model_forward.1} parent=0 // pred_fallthru
    _
  // Predicated region
  $region38: #{lstm_model_forward.1} parent=0 // pred_check
    _
  $region39: #{lstm_model_forward.1} parent=0 // pred_check_branch
    %34 = sbr.rel (0) target = $region41
  $region40: #{lstm_model_forward.1} parent=0 // pred_region
    _
  $region41: #{lstm_model_forward.1} parent=0 // pred_fallthru
    _
  %v35 = vld [vmem:[%s0] sm:$0xff]
  %v36 = vld [vmem:[%s0 + $0x8] sm:$0xff]
  %v37 = vld [vmem:[%s0 + $0x10] sm:$0xff]
  %v38 = vld [vmem:[%s0 + $0x18] sm:$0xff]
  %v39 = vld [vmem:[%s1] sm:$0x1]
  %v40 = vld [vmem:[%s2] sm:$0x3]
  %v41 = vld [vmem:[%s3] sm:$0x1]
  %43 = vset.pattern.permute.xlu0 0
  %44 = vperm.xlu0 %43, %v35
  %v45 = vpop.permute.xlu0 %44
  %48 = vset.pattern.permute.xlu0 0
  %49 = vperm.xlu0 %48, %v36
  %v50 = vpop.permute.xlu0 %49
  %53 = vset.pattern.permute.xlu0 0
  %54 = vperm.xlu0 %53, %v37
  %v55 = vpop.permute.xlu0 %54
  %58 = vset.pattern.permute.xlu0 0
  %59 = vperm.xlu0 %58, %v38
  %v60 = vpop.permute.xlu0 %59
  %v63 = vperm.slane %v39, 0
  %v65 = vmul.f32 %v45, %v63
  %v66 = vmul.f32 %v50, %v63
  %v67 = vmul.f32 %v55, %v63
  %v68 = vmul.f32 %v60, %v63
  %v70 = vperm.slane %v41, 0
  %v72 = vadd.f32 %v70, %v65
  %v73 = vadd.f32 %v70, %v66
  %v74 = vadd.f32 %v70, %v67
  %v75 = vadd.f32 %v70, %v68
  %v76 = vperm.slane %v40, 0
  %v77 = vmul.f32 %v76, 0.0
  %v78 = vadd.f32 %v72, %v77
  %v79 = vadd.f32 %v73, %v77
  %v80 = vadd.f32 %v74, %v77
  %v81 = vadd.f32 %v75, %v77
  %v82 = vperm.slane %v40, 1
  %v83 = vmul.f32 %v82, 0.0
  %v84 = vadd.f32 %v78, %v83
  %v85 = vadd.f32 %v79, %v83
  %v86 = vadd.f32 %v80, %v83
  %v87 = vadd.f32 %v81, %v83
  %v88 = vxor.u32 %v84, 2147483648
  %v89 = vxor.u32 %v85, 2147483648
  %v90 = vxor.u32 %v86, 2147483648
  %v91 = vxor.u32 %v87, 2147483648
  %v92 = vmul.f32 %v88, 1.442695
  %v93 = vpow.pop %v92
  %v94 = vmul.f32 %v89, 1.442695
  %v95 = vpow.pop %v94
  %v96 = vmul.f32 %v90, 1.442695
  %v97 = vpow.pop %v96
  %v98 = vmul.f32 %v91, 1.442695
  %v99 = vpow.pop %v98
  %v100 = vadd.f32 %v93, 1.0
  %v101 = vadd.f32 %v95, 1.0
  %v102 = vadd.f32 %v97, 1.0
  %v103 = vadd.f32 %v99, 1.0
  %v104 = vrcp.pop %v100
  %v105 = vmul.f32 %v100, %v104
  %v106 = vsub.f32 1.0, %v105
  %v107 = vmul.f32 %v104, %v106
  %v108 = vadd.f32 %v104, %v107
  %vm109 = vweird.f32 %v100
  %vm110 = vweird.f32 %v104
  %vm111 = vmor %vm109, %vm110
  %v112 = vsel %vm111, %v104, %v108
  %v113 = vand.u32 2147483647, %v100
  %vm114 = vcmp.eq.f32.partialorder %v113, 8.507059e+37
  %v115 = vand.u32 %v100, 2147483648
  %v116 = vor.u32 1.1754944e-38, %v115
  %v117 = vsel %vm114, %v116, %v112
  %v118 = vmul.f32 1.0, %v117
  %v119 = vrcp.pop %v101
  %v120 = vmul.f32 %v101, %v119
  %v121 = vsub.f32 1.0, %v120
  %v122 = vmul.f32 %v119, %v121
  %v123 = vadd.f32 %v119, %v122
  %vm124 = vweird.f32 %v101
  %vm125 = vweird.f32 %v119
  %vm126 = vmor %vm124, %vm125
  %v127 = vsel %vm126, %v119, %v123
  %v128 = vand.u32 2147483647, %v101
  %vm129 = vcmp.eq.f32.partialorder %v128, 8.507059e+37
  %v130 = vand.u32 %v101, 2147483648
  %v131 = vor.u32 1.1754944e-38, %v130
  %v132 = vsel %vm129, %v131, %v127
  %v133 = vmul.f32 1.0, %v132
  %v134 = vrcp.pop %v102
  %v135 = vmul.f32 %v102, %v134
  %v136 = vsub.f32 1.0, %v135
  %v137 = vmul.f32 %v134, %v136
  %v138 = vadd.f32 %v134, %v137
  %vm139 = vweird.f32 %v102
  %vm140 = vweird.f32 %v134
  %vm141 = vmor %vm139, %vm140
  %v142 = vsel %vm141, %v134, %v138
  %v143 = vand.u32 2147483647, %v102
  %vm144 = vcmp.eq.f32.partialorder %v143, 8.507059e+37
  %v145 = vand.u32 %v102, 2147483648
  %v146 = vor.u32 1.1754944e-38, %v145
  %v147 = vsel %vm144, %v146, %v142
  %v148 = vmul.f32 1.0, %v147
  %v149 = vrcp.pop %v103
  %v150 = vmul.f32 %v103, %v149
  %v151 = vsub.f32 1.0, %v150
  %v152 = vmul.f32 %v149, %v151
  %v153 = vadd.f32 %v149, %v152
  %vm154 = vweird.f32 %v103
  %vm155 = vweird.f32 %v149
  %vm156 = vmor %vm154, %vm155
  %v157 = vsel %vm156, %v149, %v153
  %v158 = vand.u32 2147483647, %v103
  %vm159 = vcmp.eq.f32.partialorder %v158, 8.507059e+37
  %v160 = vand.u32 %v103, 2147483648
  %v161 = vor.u32 1.1754944e-38, %v160
  %v162 = vsel %vm159, %v161, %v157
  %v163 = vmul.f32 1.0, %v162
  %v164 = vtanh.pop %v84
  %v165 = vtanh.pop %v85
  %v166 = vtanh.pop %v86
  %v167 = vtanh.pop %v87
  %v168 = vmul.f32 %v118, 0.0
  %v169 = vmul.f32 %v133, 0.0
  %v170 = vmul.f32 %v148, 0.0
  %v171 = vmul.f32 %v163, 0.0
  %176 = vrot.lane.b32.xlu0 %v164, 122
  %v177 = vpop.permute.xlu0 %176
  %178 = vrot.lane.b32.xlu0 %v165, 122
  %v179 = vpop.permute.xlu0 %178
  %180 = vrot.lane.b32.xlu0 %v166, 122
  %v181 = vpop.permute.xlu0 %180
  %182 = vrot.lane.b32.xlu0 %v167, 122
  %v183 = vpop.permute.xlu0 %182
  %v188 = vmul.f32 %v118, %v177
  %v189 = vmul.f32 %v133, %v179
  %v190 = vmul.f32 %v148, %v181
  %v191 = vmul.f32 %v163, %v183
  %196 = vrot.lane.b32.xlu0 %v188, 2
  %v197 = vpop.permute.xlu0 %196
  %198 = vrot.lane.b32.xlu0 %v189, 2
  %v199 = vpop.permute.xlu0 %198
  %200 = vrot.lane.b32.xlu0 %v190, 2
  %v201 = vpop.permute.xlu0 %200
  %202 = vrot.lane.b32.xlu0 %v191, 2
  %v203 = vpop.permute.xlu0 %202
  %v208 = vadd.f32 %v168, %v197
  %v209 = vadd.f32 %v169, %v199
  %v210 = vadd.f32 %v170, %v201
  %v211 = vadd.f32 %v171, %v203
  %v212 = vtanh.pop %v208
  %v213 = vtanh.pop %v209
  %v214 = vtanh.pop %v210
  %v215 = vtanh.pop %v211
  %220 = vrot.lane.b32.xlu0 %v212, 2
  %v221 = vpop.permute.xlu0 %220
  %222 = vrot.lane.b32.xlu0 %v213, 2
  %v223 = vpop.permute.xlu0 %222
  %224 = vrot.lane.b32.xlu0 %v214, 2
  %v225 = vpop.permute.xlu0 %224
  %226 = vrot.lane.b32.xlu0 %v215, 2
  %v227 = vpop.permute.xlu0 %226
  %v232 = vmul.f32 %v118, %v221
  %v233 = vmul.f32 %v133, %v223
  %v234 = vmul.f32 %v148, %v225
  %v235 = vmul.f32 %v163, %v227
  %237 = vset.pattern.permute.xlu0 4
  %238 = vperm.xlu0 %237, %v232
  %v239 = vpop.permute.xlu0 %238
  %242 = vset.pattern.permute.xlu0 4
  %243 = vperm.xlu0 %242, %v233
  %v244 = vpop.permute.xlu0 %243
  %247 = vset.pattern.permute.xlu0 4
  %248 = vperm.xlu0 %247, %v234
  %v249 = vpop.permute.xlu0 %248
  %252 = vset.pattern.permute.xlu0 4
  %253 = vperm.xlu0 %252, %v235
  %v254 = vpop.permute.xlu0 %253
  %v256 = vmul.f32 %v239, %v76
  %v257 = vmul.f32 %v244, %v76
  %v258 = vmul.f32 %v249, %v76
  %v259 = vmul.f32 %v254, %v76
  %v264 = vrot.slane %v256, 7
  %v265 = vrot.slane %v257, 7
  %v266 = vrot.slane %v258, 7
  %v267 = vrot.slane %v259, 7
  %v272 = vadd.f32 %v72, %v264
  %v273 = vadd.f32 %v73, %v265
  %v274 = vadd.f32 %v74, %v266
  %v275 = vadd.f32 %v75, %v267
  %276 = vset.pattern.permute.xlu0 5
  %277 = vperm.xlu0 %276, %v232
  %v278 = vpop.permute.xlu0 %277
  %280 = vset.pattern.permute.xlu0 5
  %281 = vperm.xlu0 %280, %v233
  %v282 = vpop.permute.xlu0 %281
  %284 = vset.pattern.permute.xlu0 5
  %285 = vperm.xlu0 %284, %v234
  %v286 = vpop.permute.xlu0 %285
  %288 = vset.pattern.permute.xlu0 5
  %289 = vperm.xlu0 %288, %v235
  %v290 = vpop.permute.xlu0 %289
  %v292 = vmul.f32 %v278, %v82
  %v293 = vmul.f32 %v282, %v82
  %v294 = vmul.f32 %v286, %v82
  %v295 = vmul.f32 %v290, %v82
  %v300 = vrot.slane %v292, 7
  %v301 = vrot.slane %v293, 7
  %v302 = vrot.slane %v294, 7
  %v303 = vrot.slane %v295, 7
  %v308 = vadd.f32 %v272, %v300
  %v309 = vadd.f32 %v273, %v301
  %v310 = vadd.f32 %v274, %v302
  %v311 = vadd.f32 %v275, %v303
  %v312 = vxor.u32 %v308, 2147483648
  %v313 = vxor.u32 %v309, 2147483648
  %v314 = vxor.u32 %v310, 2147483648
  %v315 = vxor.u32 %v311, 2147483648
  %v316 = vmul.f32 %v312, 1.442695
  %v317 = vpow.pop %v316
  %v318 = vmul.f32 %v313, 1.442695
  %v319 = vpow.pop %v318
  %v320 = vmul.f32 %v314, 1.442695
  %v321 = vpow.pop %v320
  %v322 = vmul.f32 %v315, 1.442695
  %v323 = vpow.pop %v322
  %v324 = vadd.f32 %v317, 1.0
  %v325 = vadd.f32 %v319, 1.0
  %v326 = vadd.f32 %v321, 1.0
  %v327 = vadd.f32 %v323, 1.0
  %v328 = vrcp.pop %v324
  %v329 = vmul.f32 %v324, %v328
  %v330 = vsub.f32 1.0, %v329
  %v331 = vmul.f32 %v328, %v330
  %v332 = vadd.f32 %v328, %v331
  %vm333 = vweird.f32 %v324
  %vm334 = vweird.f32 %v328
  %vm335 = vmor %vm333, %vm334
  %v336 = vsel %vm335, %v328, %v332
  %v337 = vand.u32 2147483647, %v324
  %vm338 = vcmp.eq.f32.partialorder %v337, 8.507059e+37
  %v339 = vand.u32 %v324, 2147483648
  %v340 = vor.u32 1.1754944e-38, %v339
  %v341 = vsel %vm338, %v340, %v336
  %v342 = vmul.f32 1.0, %v341
  %v343 = vrcp.pop %v325
  %v344 = vmul.f32 %v325, %v343
  %v345 = vsub.f32 1.0, %v344
  %v346 = vmul.f32 %v343, %v345
  %v347 = vadd.f32 %v343, %v346
  %vm348 = vweird.f32 %v325
  %vm349 = vweird.f32 %v343
  %vm350 = vmor %vm348, %vm349
  %v351 = vsel %vm350, %v343, %v347
  %v352 = vand.u32 2147483647, %v325
  %vm353 = vcmp.eq.f32.partialorder %v352, 8.507059e+37
  %v354 = vand.u32 %v325, 2147483648
  %v355 = vor.u32 1.1754944e-38, %v354
  %v356 = vsel %vm353, %v355, %v351
  %v357 = vmul.f32 1.0, %v356
  %v358 = vrcp.pop %v326
  %v359 = vmul.f32 %v326, %v358
  %v360 = vsub.f32 1.0, %v359
  %v361 = vmul.f32 %v358, %v360
  %v362 = vadd.f32 %v358, %v361
  %vm363 = vweird.f32 %v326
  %vm364 = vweird.f32 %v358
  %vm365 = vmor %vm363, %vm364
  %v366 = vsel %vm365, %v358, %v362
  %v367 = vand.u32 2147483647, %v326
  %vm368 = vcmp.eq.f32.partialorder %v367, 8.507059e+37
  %v369 = vand.u32 %v326, 2147483648
  %v370 = vor.u32 1.1754944e-38, %v369
  %v371 = vsel %vm368, %v370, %v366
  %v372 = vmul.f32 1.0, %v371
  %v373 = vrcp.pop %v327
  %v374 = vmul.f32 %v327, %v373
  %v375 = vsub.f32 1.0, %v374
  %v376 = vmul.f32 %v373, %v375
  %v377 = vadd.f32 %v373, %v376
  %vm378 = vweird.f32 %v327
  %vm379 = vweird.f32 %v373
  %vm380 = vmor %vm378, %vm379
  %v381 = vsel %vm380, %v373, %v377
  %v382 = vand.u32 2147483647, %v327
  %vm383 = vcmp.eq.f32.partialorder %v382, 8.507059e+37
  %v384 = vand.u32 %v327, 2147483648
  %v385 = vor.u32 1.1754944e-38, %v384
  %v386 = vsel %vm383, %v385, %v381
  %v387 = vmul.f32 1.0, %v386
  %v388 = vtanh.pop %v308
  %v389 = vtanh.pop %v309
  %v390 = vtanh.pop %v310
  %v391 = vtanh.pop %v311
  %v396 = vrot.slane %v208, 7
  %v397 = vrot.slane %v209, 7
  %v398 = vrot.slane %v210, 7
  %v399 = vrot.slane %v211, 7
  %v404 = vmul.f32 %v342, %v396
  %v405 = vmul.f32 %v357, %v397
  %v406 = vmul.f32 %v372, %v398
  %v407 = vmul.f32 %v387, %v399
  %412 = vrot.lane.b32.xlu0 %v388, 122
  %v413 = vpop.permute.xlu0 %412
  %414 = vrot.lane.b32.xlu0 %v389, 122
  %v415 = vpop.permute.xlu0 %414
  %416 = vrot.lane.b32.xlu0 %v390, 122
  %v417 = vpop.permute.xlu0 %416
  %418 = vrot.lane.b32.xlu0 %v391, 122
  %v419 = vpop.permute.xlu0 %418
  %v424 = vmul.f32 %v342, %v413
  %v425 = vmul.f32 %v357, %v415
  %v426 = vmul.f32 %v372, %v417
  %v427 = vmul.f32 %v387, %v419
  %432 = vrot.lane.b32.xlu0 %v424, 2
  %v433 = vpop.permute.xlu0 %432
  %434 = vrot.lane.b32.xlu0 %v425, 2
  %v435 = vpop.permute.xlu0 %434
  %436 = vrot.lane.b32.xlu0 %v426, 2
  %v437 = vpop.permute.xlu0 %436
  %438 = vrot.lane.b32.xlu0 %v427, 2
  %v439 = vpop.permute.xlu0 %438
  %v444 = vadd.f32 %v404, %v433
  %v445 = vadd.f32 %v405, %v435
  %v446 = vadd.f32 %v406, %v437
  %v447 = vadd.f32 %v407, %v439
  %v448 = vtanh.pop %v444
  %v449 = vtanh.pop %v445
  %v450 = vtanh.pop %v446
  %v451 = vtanh.pop %v447
  %456 = vrot.lane.b32.xlu0 %v448, 2
  %v457 = vpop.permute.xlu0 %456
  %458 = vrot.lane.b32.xlu0 %v449, 2
  %v459 = vpop.permute.xlu0 %458
  %460 = vrot.lane.b32.xlu0 %v450, 2
  %v461 = vpop.permute.xlu0 %460
  %462 = vrot.lane.b32.xlu0 %v451, 2
  %v463 = vpop.permute.xlu0 %462
  %v468 = vmul.f32 %v342, %v457
  %v469 = vmul.f32 %v357, %v459
  %v470 = vmul.f32 %v372, %v461
  %v471 = vmul.f32 %v387, %v463
  %473 = vset.pattern.permute.xlu0 4
  %474 = vperm.xlu0 %473, %v468
  %v475 = vpop.permute.xlu0 %474
  %478 = vset.pattern.permute.xlu0 4
  %479 = vperm.xlu0 %478, %v469
  %v480 = vpop.permute.xlu0 %479
  %483 = vset.pattern.permute.xlu0 4
  %484 = vperm.xlu0 %483, %v470
  %v485 = vpop.permute.xlu0 %484
  %488 = vset.pattern.permute.xlu0 4
  %489 = vperm.xlu0 %488, %v471
  %v490 = vpop.permute.xlu0 %489
  %v492 = vmul.f32 %v475, %v76
  %v493 = vmul.f32 %v480, %v76
  %v494 = vmul.f32 %v485, %v76
  %v495 = vmul.f32 %v490, %v76
  %v500 = vrot.slane %v492, 7
  %v501 = vrot.slane %v493, 7
  %v502 = vrot.slane %v494, 7
  %v503 = vrot.slane %v495, 7
  %v508 = vadd.f32 %v72, %v500
  %v509 = vadd.f32 %v73, %v501
  %v510 = vadd.f32 %v74, %v502
  %v511 = vadd.f32 %v75, %v503
  %512 = vset.pattern.permute.xlu0 5
  %513 = vperm.xlu0 %512, %v468
  %v514 = vpop.permute.xlu0 %513
  %516 = vset.pattern.permute.xlu0 5
  %517 = vperm.xlu0 %516, %v469
  %v518 = vpop.permute.xlu0 %517
  %520 = vset.pattern.permute.xlu0 5
  %521 = vperm.xlu0 %520, %v470
  %v522 = vpop.permute.xlu0 %521
  %524 = vset.pattern.permute.xlu0 5
  %525 = vperm.xlu0 %524, %v471
  %v526 = vpop.permute.xlu0 %525
  %v528 = vmul.f32 %v514, %v82
  %v529 = vmul.f32 %v518, %v82
  %v530 = vmul.f32 %v522, %v82
  %v531 = vmul.f32 %v526, %v82
  %v536 = vrot.slane %v528, 7
  %v537 = vrot.slane %v529, 7
  %v538 = vrot.slane %v530, 7
  %v539 = vrot.slane %v531, 7
  %v544 = vadd.f32 %v508, %v536
  %v545 = vadd.f32 %v509, %v537
  %v546 = vadd.f32 %v510, %v538
  %v547 = vadd.f32 %v511, %v539
  %v548 = vxor.u32 %v544, 2147483648
  %v549 = vxor.u32 %v545, 2147483648
  %v550 = vxor.u32 %v546, 2147483648
  %v551 = vxor.u32 %v547, 2147483648
  %v552 = vmul.f32 %v548, 1.442695
  %v553 = vpow.pop %v552
  %v554 = vmul.f32 %v549, 1.442695
  %v555 = vpow.pop %v554
  %v556 = vmul.f32 %v550, 1.442695
  %v557 = vpow.pop %v556
  %v558 = vmul.f32 %v551, 1.442695
  %v559 = vpow.pop %v558
  %v560 = vadd.f32 %v553, 1.0
  %v561 = vadd.f32 %v555, 1.0
  %v562 = vadd.f32 %v557, 1.0
  %v563 = vadd.f32 %v559, 1.0
  %v564 = vrcp.pop %v560
  %v565 = vmul.f32 %v560, %v564
  %v566 = vsub.f32 1.0, %v565
  %v567 = vmul.f32 %v564, %v566
  %v568 = vadd.f32 %v564, %v567
  %vm569 = vweird.f32 %v560
  %vm570 = vweird.f32 %v564
  %vm571 = vmor %vm569, %vm570
  %v572 = vsel %vm571, %v564, %v568
  %v573 = vand.u32 2147483647, %v560
  %vm574 = vcmp.eq.f32.partialorder %v573, 8.507059e+37
  %v575 = vand.u32 %v560, 2147483648
  %v576 = vor.u32 1.1754944e-38, %v575
  %v577 = vsel %vm574, %v576, %v572
  %v578 = vmul.f32 1.0, %v577
  %v579 = vrcp.pop %v561
  %v580 = vmul.f32 %v561, %v579
  %v581 = vsub.f32 1.0, %v580
  %v582 = vmul.f32 %v579, %v581
  %v583 = vadd.f32 %v579, %v582
  %vm584 = vweird.f32 %v561
  %vm585 = vweird.f32 %v579
  %vm586 = vmor %vm584, %vm585
  %v587 = vsel %vm586, %v579, %v583
  %v588 = vand.u32 2147483647, %v561
  %vm589 = vcmp.eq.f32.partialorder %v588, 8.507059e+37
  %v590 = vand.u32 %v561, 2147483648
  %v591 = vor.u32 1.1754944e-38, %v590
  %v592 = vsel %vm589, %v591, %v587
  %v593 = vmul.f32 1.0, %v592
  %v594 = vrcp.pop %v562
  %v595 = vmul.f32 %v562, %v594
  %v596 = vsub.f32 1.0, %v595
  %v597 = vmul.f32 %v594, %v596
  %v598 = vadd.f32 %v594, %v597
  %vm599 = vweird.f32 %v562
  %vm600 = vweird.f32 %v594
  %vm601 = vmor %vm599, %vm600
  %v602 = vsel %vm601, %v594, %v598
  %v603 = vand.u32 2147483647, %v562
  %vm604 = vcmp.eq.f32.partialorder %v603, 8.507059e+37
  %v605 = vand.u32 %v562, 2147483648
  %v606 = vor.u32 1.1754944e-38, %v605
  %v607 = vsel %vm604, %v606, %v602
  %v608 = vmul.f32 1.0, %v607
  %v609 = vrcp.pop %v563
  %v610 = vmul.f32 %v563, %v609
  %v611 = vsub.f32 1.0, %v610
  %v612 = vmul.f32 %v609, %v611
  %v613 = vadd.f32 %v609, %v612
  %vm614 = vweird.f32 %v563
  %vm615 = vweird.f32 %v609
  %vm616 = vmor %vm614, %vm615
  %v617 = vsel %vm616, %v609, %v613
  %v618 = vand.u32 2147483647, %v563
  %vm619 = vcmp.eq.f32.partialorder %v618, 8.507059e+37
  %v620 = vand.u32 %v563, 2147483648
  %v621 = vor.u32 1.1754944e-38, %v620
  %v622 = vsel %vm619, %v621, %v617
  %v623 = vmul.f32 1.0, %v622
  %v624 = vtanh.pop %v544
  %v625 = vtanh.pop %v545
  %v626 = vtanh.pop %v546
  %v627 = vtanh.pop %v547
  %v632 = vrot.slane %v444, 7
  %v633 = vrot.slane %v445, 7
  %v634 = vrot.slane %v446, 7
  %v635 = vrot.slane %v447, 7
  %v640 = vmul.f32 %v578, %v632
  %v641 = vmul.f32 %v593, %v633
  %v642 = vmul.f32 %v608, %v634
  %v643 = vmul.f32 %v623, %v635
  %648 = vrot.lane.b32.xlu0 %v624, 122
  %v649 = vpop.permute.xlu0 %648
  %650 = vrot.lane.b32.xlu0 %v625, 122
  %v651 = vpop.permute.xlu0 %650
  %652 = vrot.lane.b32.xlu0 %v626, 122
  %v653 = vpop.permute.xlu0 %652
  %654 = vrot.lane.b32.xlu0 %v627, 122
  %v655 = vpop.permute.xlu0 %654
  %v660 = vmul.f32 %v578, %v649
  %v661 = vmul.f32 %v593, %v651
  %v662 = vmul.f32 %v608, %v653
  %v663 = vmul.f32 %v623, %v655
  %668 = vrot.lane.b32.xlu0 %v660, 2
  %v669 = vpop.permute.xlu0 %668
  %670 = vrot.lane.b32.xlu0 %v661, 2
  %v671 = vpop.permute.xlu0 %670
  %672 = vrot.lane.b32.xlu0 %v662, 2
  %v673 = vpop.permute.xlu0 %672
  %674 = vrot.lane.b32.xlu0 %v663, 2
  %v675 = vpop.permute.xlu0 %674
  %v680 = vadd.f32 %v640, %v669
  %v681 = vadd.f32 %v641, %v671
  %v682 = vadd.f32 %v642, %v673
  %v683 = vadd.f32 %v643, %v675
  %v684 = vtanh.pop %v680
  %v685 = vtanh.pop %v681
  %v686 = vtanh.pop %v682
  %v687 = vtanh.pop %v683
  %692 = vrot.lane.b32.xlu0 %v684, 2
  %v693 = vpop.permute.xlu0 %692
  %694 = vrot.lane.b32.xlu0 %v685, 2
  %v695 = vpop.permute.xlu0 %694
  %696 = vrot.lane.b32.xlu0 %v686, 2
  %v697 = vpop.permute.xlu0 %696
  %698 = vrot.lane.b32.xlu0 %v687, 2
  %v699 = vpop.permute.xlu0 %698
  %v704 = vmul.f32 %v578, %v693
  %v705 = vmul.f32 %v593, %v695
  %v706 = vmul.f32 %v608, %v697
  %v707 = vmul.f32 %v623, %v699
  %709 = vset.pattern.permute.xlu0 4
  %710 = vperm.xlu0 %709, %v704
  %v711 = vpop.permute.xlu0 %710
  %714 = vset.pattern.permute.xlu0 4
  %715 = vperm.xlu0 %714, %v705
  %v716 = vpop.permute.xlu0 %715
  %719 = vset.pattern.permute.xlu0 4
  %720 = vperm.xlu0 %719, %v706
  %v721 = vpop.permute.xlu0 %720
  %724 = vset.pattern.permute.xlu0 4
  %725 = vperm.xlu0 %724, %v707
  %v726 = vpop.permute.xlu0 %725
  %v728 = vmul.f32 %v711, %v76
  %v729 = vmul.f32 %v716, %v76
  %v730 = vmul.f32 %v721, %v76
  %v731 = vmul.f32 %v726, %v76
  %v736 = vrot.slane %v728, 7
  %v737 = vrot.slane %v729, 7
  %v738 = vrot.slane %v730, 7
  %v739 = vrot.slane %v731, 7
  %v744 = vadd.f32 %v72, %v736
  %v745 = vadd.f32 %v73, %v737
  %v746 = vadd.f32 %v74, %v738
  %v747 = vadd.f32 %v75, %v739
  %748 = vset.pattern.permute.xlu0 5
  %749 = vperm.xlu0 %748, %v704
  %v750 = vpop.permute.xlu0 %749
  %752 = vset.pattern.permute.xlu0 5
  %753 = vperm.xlu0 %752, %v705
  %v754 = vpop.permute.xlu0 %753
  %756 = vset.pattern.permute.xlu0 5
  %757 = vperm.xlu0 %756, %v706
  %v758 = vpop.permute.xlu0 %757
  %760 = vset.pattern.permute.xlu0 5
  %761 = vperm.xlu0 %760, %v707
  %v762 = vpop.permute.xlu0 %761
  %v764 = vmul.f32 %v750, %v82
  %v765 = vmul.f32 %v754, %v82
  %v766 = vmul.f32 %v758, %v82
  %v767 = vmul.f32 %v762, %v82
  %v772 = vrot.slane %v764, 7
  %v773 = vrot.slane %v765, 7
  %v774 = vrot.slane %v766, 7
  %v775 = vrot.slane %v767, 7
  %v780 = vadd.f32 %v744, %v772
  %v781 = vadd.f32 %v745, %v773
  %v782 = vadd.f32 %v746, %v774
  %v783 = vadd.f32 %v747, %v775
  %v784 = vxor.u32 %v780, 2147483648
  %v785 = vxor.u32 %v781, 2147483648
  %v786 = vxor.u32 %v782, 2147483648
  %v787 = vxor.u32 %v783, 2147483648
  %v788 = vmul.f32 %v784, 1.442695
  %v789 = vpow.pop %v788
  %v790 = vmul.f32 %v785, 1.442695
  %v791 = vpow.pop %v790
  %v792 = vmul.f32 %v786, 1.442695
  %v793 = vpow.pop %v792
  %v794 = vmul.f32 %v787, 1.442695
  %v795 = vpow.pop %v794
  %v796 = vadd.f32 %v789, 1.0
  %v797 = vadd.f32 %v791, 1.0
  %v798 = vadd.f32 %v793, 1.0
  %v799 = vadd.f32 %v795, 1.0
  %v800 = vrcp.pop %v796
  %v801 = vmul.f32 %v796, %v800
  %v802 = vsub.f32 1.0, %v801
  %v803 = vmul.f32 %v800, %v802
  %v804 = vadd.f32 %v800, %v803
  %vm805 = vweird.f32 %v796
  %vm806 = vweird.f32 %v800
  %vm807 = vmor %vm805, %vm806
  %v808 = vsel %vm807, %v800, %v804
  %v809 = vand.u32 2147483647, %v796
  %vm810 = vcmp.eq.f32.partialorder %v809, 8.507059e+37
  %v811 = vand.u32 %v796, 2147483648
  %v812 = vor.u32 1.1754944e-38, %v811
  %v813 = vsel %vm810, %v812, %v808
  %v814 = vmul.f32 1.0, %v813
  %v815 = vrcp.pop %v797
  %v816 = vmul.f32 %v797, %v815
  %v817 = vsub.f32 1.0, %v816
  %v818 = vmul.f32 %v815, %v817
  %v819 = vadd.f32 %v815, %v818
  %vm820 = vweird.f32 %v797
  %vm821 = vweird.f32 %v815
  %vm822 = vmor %vm820, %vm821
  %v823 = vsel %vm822, %v815, %v819
  %v824 = vand.u32 2147483647, %v797
  %vm825 = vcmp.eq.f32.partialorder %v824, 8.507059e+37
  %v826 = vand.u32 %v797, 2147483648
  %v827 = vor.u32 1.1754944e-38, %v826
  %v828 = vsel %vm825, %v827, %v823
  %v829 = vmul.f32 1.0, %v828
  %v830 = vrcp.pop %v798
  %v831 = vmul.f32 %v798, %v830
  %v832 = vsub.f32 1.0, %v831
  %v833 = vmul.f32 %v830, %v832
  %v834 = vadd.f32 %v830, %v833
  %vm835 = vweird.f32 %v798
  %vm836 = vweird.f32 %v830
  %vm837 = vmor %vm835, %vm836
  %v838 = vsel %vm837, %v830, %v834
  %v839 = vand.u32 2147483647, %v798
  %vm840 = vcmp.eq.f32.partialorder %v839, 8.507059e+37
  %v841 = vand.u32 %v798, 2147483648
  %v842 = vor.u32 1.1754944e-38, %v841
  %v843 = vsel %vm840, %v842, %v838
  %v844 = vmul.f32 1.0, %v843
  %v845 = vrcp.pop %v799
  %v846 = vmul.f32 %v799, %v845
  %v847 = vsub.f32 1.0, %v846
  %v848 = vmul.f32 %v845, %v847
  %v849 = vadd.f32 %v845, %v848
  %vm850 = vweird.f32 %v799
  %vm851 = vweird.f32 %v845
  %vm852 = vmor %vm850, %vm851
  %v853 = vsel %vm852, %v845, %v849
  %v854 = vand.u32 2147483647, %v799
  %vm855 = vcmp.eq.f32.partialorder %v854, 8.507059e+37
  %v856 = vand.u32 %v799, 2147483648
  %v857 = vor.u32 1.1754944e-38, %v856
  %v858 = vsel %vm855, %v857, %v853
  %v859 = vmul.f32 1.0, %v858
  %v860 = vtanh.pop %v780
  %v861 = vtanh.pop %v781
  %v862 = vtanh.pop %v782
  %v863 = vtanh.pop %v783
  %v868 = vrot.slane %v680, 7
  %v869 = vrot.slane %v681, 7
  %v870 = vrot.slane %v682, 7
  %v871 = vrot.slane %v683, 7
  %v876 = vmul.f32 %v814, %v868
  %v877 = vmul.f32 %v829, %v869
  %v878 = vmul.f32 %v844, %v870
  %v879 = vmul.f32 %v859, %v871
  %884 = vrot.lane.b32.xlu0 %v860, 122
  %v885 = vpop.permute.xlu0 %884
  %886 = vrot.lane.b32.xlu0 %v861, 122
  %v887 = vpop.permute.xlu0 %886
  %888 = vrot.lane.b32.xlu0 %v862, 122
  %v889 = vpop.permute.xlu0 %888
  %890 = vrot.lane.b32.xlu0 %v863, 122
  %v891 = vpop.permute.xlu0 %890
  %v896 = vmul.f32 %v814, %v885
  %v897 = vmul.f32 %v829, %v887
  %v898 = vmul.f32 %v844, %v889
  %v899 = vmul.f32 %v859, %v891
  %904 = vrot.lane.b32.xlu0 %v896, 2
  %v905 = vpop.permute.xlu0 %904
  %906 = vrot.lane.b32.xlu0 %v897, 2
  %v907 = vpop.permute.xlu0 %906
  %908 = vrot.lane.b32.xlu0 %v898, 2
  %v909 = vpop.permute.xlu0 %908
  %910 = vrot.lane.b32.xlu0 %v899, 2
  %v911 = vpop.permute.xlu0 %910
  %v916 = vadd.f32 %v876, %v905
  %v917 = vadd.f32 %v877, %v907
  %v918 = vadd.f32 %v878, %v909
  %v919 = vadd.f32 %v879, %v911
  %v920 = vtanh.pop %v916
  %v921 = vtanh.pop %v917
  %v922 = vtanh.pop %v918
  %v923 = vtanh.pop %v919
  %928 = vrot.lane.b32.xlu0 %v920, 2
  %v929 = vpop.permute.xlu0 %928
  %930 = vrot.lane.b32.xlu0 %v921, 2
  %v931 = vpop.permute.xlu0 %930
  %932 = vrot.lane.b32.xlu0 %v922, 2
  %v933 = vpop.permute.xlu0 %932
  %934 = vrot.lane.b32.xlu0 %v923, 2
  %v935 = vpop.permute.xlu0 %934
  %v940 = vmul.f32 %v814, %v929
  %v941 = vmul.f32 %v829, %v931
  %v942 = vmul.f32 %v844, %v933
  %v943 = vmul.f32 %v859, %v935
  %945 = vset.pattern.permute.xlu0 4
  %946 = vperm.xlu0 %945, %v940
  %v947 = vpop.permute.xlu0 %946
  %950 = vset.pattern.permute.xlu0 4
  %951 = vperm.xlu0 %950, %v941
  %v952 = vpop.permute.xlu0 %951
  %955 = vset.pattern.permute.xlu0 4
  %956 = vperm.xlu0 %955, %v942
  %v957 = vpop.permute.xlu0 %956
  %960 = vset.pattern.permute.xlu0 4
  %961 = vperm.xlu0 %960, %v943
  %v962 = vpop.permute.xlu0 %961
  %v964 = vmul.f32 %v947, %v76
  %v965 = vmul.f32 %v952, %v76
  %v966 = vmul.f32 %v957, %v76
  %v967 = vmul.f32 %v962, %v76
  %v972 = vrot.slane %v964, 7
  %v973 = vrot.slane %v965, 7
  %v974 = vrot.slane %v966, 7
  %v975 = vrot.slane %v967, 7
  %v980 = vadd.f32 %v72, %v972
  %v981 = vadd.f32 %v73, %v973
  %v982 = vadd.f32 %v74, %v974
  %v983 = vadd.f32 %v75, %v975
  %984 = vset.pattern.permute.xlu0 5
  %985 = vperm.xlu0 %984, %v940
  %v986 = vpop.permute.xlu0 %985
  %988 = vset.pattern.permute.xlu0 5
  %989 = vperm.xlu0 %988, %v941
  %v990 = vpop.permute.xlu0 %989
  %992 = vset.pattern.permute.xlu0 5
  %993 = vperm.xlu0 %992, %v942
  %v994 = vpop.permute.xlu0 %993
  %996 = vset.pattern.permute.xlu0 5
  %997 = vperm.xlu0 %996, %v943
  %v998 = vpop.permute.xlu0 %997
  %v1000 = vmul.f32 %v986, %v82
  %v1001 = vmul.f32 %v990, %v82
  %v1002 = vmul.f32 %v994, %v82
  %v1003 = vmul.f32 %v998, %v82
  %v1008 = vrot.slane %v1000, 7
  %v1009 = vrot.slane %v1001, 7
  %v1010 = vrot.slane %v1002, 7
  %v1011 = vrot.slane %v1003, 7
  %v1016 = vadd.f32 %v980, %v1008
  %v1017 = vadd.f32 %v981, %v1009
  %v1018 = vadd.f32 %v982, %v1010
  %v1019 = vadd.f32 %v983, %v1011
  %v1020 = vxor.u32 %v1016, 2147483648
  %v1021 = vxor.u32 %v1017, 2147483648
  %v1022 = vxor.u32 %v1018, 2147483648
  %v1023 = vxor.u32 %v1019, 2147483648
  %v1024 = vmul.f32 %v1020, 1.442695
  %v1025 = vpow.pop %v1024
  %v1026 = vmul.f32 %v1021, 1.442695
  %v1027 = vpow.pop %v1026
  %v1028 = vmul.f32 %v1022, 1.442695
  %v1029 = vpow.pop %v1028
  %v1030 = vmul.f32 %v1023, 1.442695
  %v1031 = vpow.pop %v1030
  %v1032 = vadd.f32 %v1025, 1.0
  %v1033 = vadd.f32 %v1027, 1.0
  %v1034 = vadd.f32 %v1029, 1.0
  %v1035 = vadd.f32 %v1031, 1.0
  %v1036 = vrcp.pop %v1032
  %v1037 = vmul.f32 %v1032, %v1036
  %v1038 = vsub.f32 1.0, %v1037
  %v1039 = vmul.f32 %v1036, %v1038
  %v1040 = vadd.f32 %v1036, %v1039
  %vm1041 = vweird.f32 %v1032
  %vm1042 = vweird.f32 %v1036
  %vm1043 = vmor %vm1041, %vm1042
  %v1044 = vsel %vm1043, %v1036, %v1040
  %v1045 = vand.u32 2147483647, %v1032
  %vm1046 = vcmp.eq.f32.partialorder %v1045, 8.507059e+37
  %v1047 = vand.u32 %v1032, 2147483648
  %v1048 = vor.u32 1.1754944e-38, %v1047
  %v1049 = vsel %vm1046, %v1048, %v1044
  %v1050 = vmul.f32 1.0, %v1049
  %v1051 = vrcp.pop %v1033
  %v1052 = vmul.f32 %v1033, %v1051
  %v1053 = vsub.f32 1.0, %v1052
  %v1054 = vmul.f32 %v1051, %v1053
  %v1055 = vadd.f32 %v1051, %v1054
  %vm1056 = vweird.f32 %v1033
  %vm1057 = vweird.f32 %v1051
  %vm1058 = vmor %vm1056, %vm1057
  %v1059 = vsel %vm1058, %v1051, %v1055
  %v1060 = vand.u32 2147483647, %v1033
  %vm1061 = vcmp.eq.f32.partialorder %v1060, 8.507059e+37
  %v1062 = vand.u32 %v1033, 2147483648
  %v1063 = vor.u32 1.1754944e-38, %v1062
  %v1064 = vsel %vm1061, %v1063, %v1059
  %v1065 = vmul.f32 1.0, %v1064
  %v1066 = vrcp.pop %v1034
  %v1067 = vmul.f32 %v1034, %v1066
  %v1068 = vsub.f32 1.0, %v1067
  %v1069 = vmul.f32 %v1066, %v1068
  %v1070 = vadd.f32 %v1066, %v1069
  %vm1071 = vweird.f32 %v1034
  %vm1072 = vweird.f32 %v1066
  %vm1073 = vmor %vm1071, %vm1072
  %v1074 = vsel %vm1073, %v1066, %v1070
  %v1075 = vand.u32 2147483647, %v1034
  %vm1076 = vcmp.eq.f32.partialorder %v1075, 8.507059e+37
  %v1077 = vand.u32 %v1034, 2147483648
  %v1078 = vor.u32 1.1754944e-38, %v1077
  %v1079 = vsel %vm1076, %v1078, %v1074
  %v1080 = vmul.f32 1.0, %v1079
  %v1081 = vrcp.pop %v1035
  %v1082 = vmul.f32 %v1035, %v1081
  %v1083 = vsub.f32 1.0, %v1082
  %v1084 = vmul.f32 %v1081, %v1083
  %v1085 = vadd.f32 %v1081, %v1084
  %vm1086 = vweird.f32 %v1035
  %vm1087 = vweird.f32 %v1081
  %vm1088 = vmor %vm1086, %vm1087
  %v1089 = vsel %vm1088, %v1081, %v1085
  %v1090 = vand.u32 2147483647, %v1035
  %vm1091 = vcmp.eq.f32.partialorder %v1090, 8.507059e+37
  %v1092 = vand.u32 %v1035, 2147483648
  %v1093 = vor.u32 1.1754944e-38, %v1092
  %v1094 = vsel %vm1091, %v1093, %v1089
  %v1095 = vmul.f32 1.0, %v1094
  %v1096 = vtanh.pop %v1016
  %v1097 = vtanh.pop %v1017
  %v1098 = vtanh.pop %v1018
  %v1099 = vtanh.pop %v1019
  %v1104 = vrot.slane %v916, 7
  %v1105 = vrot.slane %v917, 7
  %v1106 = vrot.slane %v918, 7
  %v1107 = vrot.slane %v919, 7
  %v1112 = vmul.f32 %v1050, %v1104
  %v1113 = vmul.f32 %v1065, %v1105
  %v1114 = vmul.f32 %v1080, %v1106
  %v1115 = vmul.f32 %v1095, %v1107
  %1120 = vrot.lane.b32.xlu0 %v1096, 122
  %v1121 = vpop.permute.xlu0 %1120
  %1122 = vrot.lane.b32.xlu0 %v1097, 122
  %v1123 = vpop.permute.xlu0 %1122
  %1124 = vrot.lane.b32.xlu0 %v1098, 122
  %v1125 = vpop.permute.xlu0 %1124
  %1126 = vrot.lane.b32.xlu0 %v1099, 122
  %v1127 = vpop.permute.xlu0 %1126
  %v1132 = vmul.f32 %v1050, %v1121
  %v1133 = vmul.f32 %v1065, %v1123
  %v1134 = vmul.f32 %v1080, %v1125
  %v1135 = vmul.f32 %v1095, %v1127
  %1140 = vrot.lane.b32.xlu0 %v1132, 2
  %v1141 = vpop.permute.xlu0 %1140
  %1142 = vrot.lane.b32.xlu0 %v1133, 2
  %v1143 = vpop.permute.xlu0 %1142
  %1144 = vrot.lane.b32.xlu0 %v1134, 2
  %v1145 = vpop.permute.xlu0 %1144
  %1146 = vrot.lane.b32.xlu0 %v1135, 2
  %v1147 = vpop.permute.xlu0 %1146
  %v1152 = vadd.f32 %v1112, %v1141
  %v1153 = vadd.f32 %v1113, %v1143
  %v1154 = vadd.f32 %v1114, %v1145
  %v1155 = vadd.f32 %v1115, %v1147
  %v1156 = vtanh.pop %v1152
  %v1157 = vtanh.pop %v1153
  %v1158 = vtanh.pop %v1154
  %v1159 = vtanh.pop %v1155
  %1164 = vrot.lane.b32.xlu0 %v1156, 2
  %v1165 = vpop.permute.xlu0 %1164
  %1166 = vrot.lane.b32.xlu0 %v1157, 2
  %v1167 = vpop.permute.xlu0 %1166
  %1168 = vrot.lane.b32.xlu0 %v1158, 2
  %v1169 = vpop.permute.xlu0 %1168
  %1170 = vrot.lane.b32.xlu0 %v1159, 2
  %v1171 = vpop.permute.xlu0 %1170
  %v1176 = vmul.f32 %v1050, %v1165
  %v1177 = vmul.f32 %v1065, %v1167
  %v1178 = vmul.f32 %v1080, %v1169
  %v1179 = vmul.f32 %v1095, %v1171
  %1181 = vset.pattern.permute.xlu0 4
  %1182 = vperm.xlu0 %1181, %v1176
  %v1183 = vpop.permute.xlu0 %1182
  %1186 = vset.pattern.permute.xlu0 4
  %1187 = vperm.xlu0 %1186, %v1177
  %v1188 = vpop.permute.xlu0 %1187
  %1191 = vset.pattern.permute.xlu0 4
  %1192 = vperm.xlu0 %1191, %v1178
  %v1193 = vpop.permute.xlu0 %1192
  %1196 = vset.pattern.permute.xlu0 4
  %1197 = vperm.xlu0 %1196, %v1179
  %v1198 = vpop.permute.xlu0 %1197
  %v1200 = vmul.f32 %v1183, %v76
  %v1201 = vmul.f32 %v1188, %v76
  %v1202 = vmul.f32 %v1193, %v76
  %v1203 = vmul.f32 %v1198, %v76
  %v1208 = vrot.slane %v1200, 7
  %v1209 = vrot.slane %v1201, 7
  %v1210 = vrot.slane %v1202, 7
  %v1211 = vrot.slane %v1203, 7
  %v1216 = vadd.f32 %v72, %v1208
  %v1217 = vadd.f32 %v73, %v1209
  %v1218 = vadd.f32 %v74, %v1210
  %v1219 = vadd.f32 %v75, %v1211
  %1220 = vset.pattern.permute.xlu0 5
  %1221 = vperm.xlu0 %1220, %v1176
  %v1222 = vpop.permute.xlu0 %1221
  %1224 = vset.pattern.permute.xlu0 5
  %1225 = vperm.xlu0 %1224, %v1177
  %v1226 = vpop.permute.xlu0 %1225
  %1228 = vset.pattern.permute.xlu0 5
  %1229 = vperm.xlu0 %1228, %v1178
  %v1230 = vpop.permute.xlu0 %1229
  %1232 = vset.pattern.permute.xlu0 5
  %1233 = vperm.xlu0 %1232, %v1179
  %v1234 = vpop.permute.xlu0 %1233
  %v1236 = vmul.f32 %v1222, %v82
  %v1237 = vmul.f32 %v1226, %v82
  %v1238 = vmul.f32 %v1230, %v82
  %v1239 = vmul.f32 %v1234, %v82
  %v1244 = vrot.slane %v1236, 7
  %v1245 = vrot.slane %v1237, 7
  %v1246 = vrot.slane %v1238, 7
  %v1247 = vrot.slane %v1239, 7
  %v1252 = vadd.f32 %v1216, %v1244
  %v1253 = vadd.f32 %v1217, %v1245
  %v1254 = vadd.f32 %v1218, %v1246
  %v1255 = vadd.f32 %v1219, %v1247
  %v1256 = vxor.u32 %v1252, 2147483648
  %v1257 = vxor.u32 %v1253, 2147483648
  %v1258 = vxor.u32 %v1254, 2147483648
  %v1259 = vxor.u32 %v1255, 2147483648
  %v1260 = vmul.f32 %v1256, 1.442695
  %v1261 = vpow.pop %v1260
  %v1262 = vmul.f32 %v1257, 1.442695
  %v1263 = vpow.pop %v1262
  %v1264 = vmul.f32 %v1258, 1.442695
  %v1265 = vpow.pop %v1264
  %v1266 = vmul.f32 %v1259, 1.442695
  %v1267 = vpow.pop %v1266
  %v1268 = vadd.f32 %v1261, 1.0
  %v1269 = vadd.f32 %v1263, 1.0
  %v1270 = vadd.f32 %v1265, 1.0
  %v1271 = vadd.f32 %v1267, 1.0
  %v1272 = vrcp.pop %v1268
  %v1273 = vmul.f32 %v1268, %v1272
  %v1274 = vsub.f32 1.0, %v1273
  %v1275 = vmul.f32 %v1272, %v1274
  %v1276 = vadd.f32 %v1272, %v1275
  %vm1277 = vweird.f32 %v1268
  %vm1278 = vweird.f32 %v1272
  %vm1279 = vmor %vm1277, %vm1278
  %v1280 = vsel %vm1279, %v1272, %v1276
  %v1281 = vand.u32 2147483647, %v1268
  %vm1282 = vcmp.eq.f32.partialorder %v1281, 8.507059e+37
  %v1283 = vand.u32 %v1268, 2147483648
  %v1284 = vor.u32 1.1754944e-38, %v1283
  %v1285 = vsel %vm1282, %v1284, %v1280
  %v1286 = vmul.f32 1.0, %v1285
  %v1287 = vrcp.pop %v1269
  %v1288 = vmul.f32 %v1269, %v1287
  %v1289 = vsub.f32 1.0, %v1288
  %v1290 = vmul.f32 %v1287, %v1289
  %v1291 = vadd.f32 %v1287, %v1290
  %vm1292 = vweird.f32 %v1269
  %vm1293 = vweird.f32 %v1287
  %vm1294 = vmor %vm1292, %vm1293
  %v1295 = vsel %vm1294, %v1287, %v1291
  %v1296 = vand.u32 2147483647, %v1269
  %vm1297 = vcmp.eq.f32.partialorder %v1296, 8.507059e+37
  %v1298 = vand.u32 %v1269, 2147483648
  %v1299 = vor.u32 1.1754944e-38, %v1298
  %v1300 = vsel %vm1297, %v1299, %v1295
  %v1301 = vmul.f32 1.0, %v1300
  %v1302 = vrcp.pop %v1270
  %v1303 = vmul.f32 %v1270, %v1302
  %v1304 = vsub.f32 1.0, %v1303
  %v1305 = vmul.f32 %v1302, %v1304
  %v1306 = vadd.f32 %v1302, %v1305
  %vm1307 = vweird.f32 %v1270
  %vm1308 = vweird.f32 %v1302
  %vm1309 = vmor %vm1307, %vm1308
  %v1310 = vsel %vm1309, %v1302, %v1306
  %v1311 = vand.u32 2147483647, %v1270
  %vm1312 = vcmp.eq.f32.partialorder %v1311, 8.507059e+37
  %v1313 = vand.u32 %v1270, 2147483648
  %v1314 = vor.u32 1.1754944e-38, %v1313
  %v1315 = vsel %vm1312, %v1314, %v1310
  %v1316 = vmul.f32 1.0, %v1315
  %v1317 = vrcp.pop %v1271
  %v1318 = vmul.f32 %v1271, %v1317
  %v1319 = vsub.f32 1.0, %v1318
  %v1320 = vmul.f32 %v1317, %v1319
  %v1321 = vadd.f32 %v1317, %v1320
  %vm1322 = vweird.f32 %v1271
  %vm1323 = vweird.f32 %v1317
  %vm1324 = vmor %vm1322, %vm1323
  %v1325 = vsel %vm1324, %v1317, %v1321
  %v1326 = vand.u32 2147483647, %v1271
  %vm1327 = vcmp.eq.f32.partialorder %v1326, 8.507059e+37
  %v1328 = vand.u32 %v1271, 2147483648
  %v1329 = vor.u32 1.1754944e-38, %v1328
  %v1330 = vsel %vm1327, %v1329, %v1325
  %v1331 = vmul.f32 1.0, %v1330
  %v1332 = vtanh.pop %v1252
  %v1333 = vtanh.pop %v1253
  %v1334 = vtanh.pop %v1254
  %v1335 = vtanh.pop %v1255
  %v1340 = vrot.slane %v1152, 7
  %v1341 = vrot.slane %v1153, 7
  %v1342 = vrot.slane %v1154, 7
  %v1343 = vrot.slane %v1155, 7
  %v1348 = vmul.f32 %v1286, %v1340
  %v1349 = vmul.f32 %v1301, %v1341
  %v1350 = vmul.f32 %v1316, %v1342
  %v1351 = vmul.f32 %v1331, %v1343
  %1356 = vrot.lane.b32.xlu0 %v1332, 122
  %v1357 = vpop.permute.xlu0 %1356
  %1358 = vrot.lane.b32.xlu0 %v1333, 122
  %v1359 = vpop.permute.xlu0 %1358
  %1360 = vrot.lane.b32.xlu0 %v1334, 122
  %v1361 = vpop.permute.xlu0 %1360
  %1362 = vrot.lane.b32.xlu0 %v1335, 122
  %v1363 = vpop.permute.xlu0 %1362
  %v1368 = vmul.f32 %v1286, %v1357
  %v1369 = vmul.f32 %v1301, %v1359
  %v1370 = vmul.f32 %v1316, %v1361
  %v1371 = vmul.f32 %v1331, %v1363
  %1376 = vrot.lane.b32.xlu0 %v1368, 2
  %v1377 = vpop.permute.xlu0 %1376
  %1378 = vrot.lane.b32.xlu0 %v1369, 2
  %v1379 = vpop.permute.xlu0 %1378
  %1380 = vrot.lane.b32.xlu0 %v1370, 2
  %v1381 = vpop.permute.xlu0 %1380
  %1382 = vrot.lane.b32.xlu0 %v1371, 2
  %v1383 = vpop.permute.xlu0 %1382
  %v1388 = vadd.f32 %v1348, %v1377
  %v1389 = vadd.f32 %v1349, %v1379
  %v1390 = vadd.f32 %v1350, %v1381
  %v1391 = vadd.f32 %v1351, %v1383
  %v1392 = vtanh.pop %v1388
  %v1393 = vtanh.pop %v1389
  %v1394 = vtanh.pop %v1390
  %v1395 = vtanh.pop %v1391
  %1400 = vrot.lane.b32.xlu0 %v1392, 2
  %v1401 = vpop.permute.xlu0 %1400
  %1402 = vrot.lane.b32.xlu0 %v1393, 2
  %v1403 = vpop.permute.xlu0 %1402
  %1404 = vrot.lane.b32.xlu0 %v1394, 2
  %v1405 = vpop.permute.xlu0 %1404
  %1406 = vrot.lane.b32.xlu0 %v1395, 2
  %v1407 = vpop.permute.xlu0 %1406
  %v1412 = vmul.f32 %v1286, %v1401
  %v1413 = vmul.f32 %v1301, %v1403
  %v1414 = vmul.f32 %v1316, %v1405
  %v1415 = vmul.f32 %v1331, %v1407
  %1417 = vset.pattern.permute.xlu0 4
  %1418 = vperm.xlu0 %1417, %v1412
  %v1419 = vpop.permute.xlu0 %1418
  %1422 = vset.pattern.permute.xlu0 4
  %1423 = vperm.xlu0 %1422, %v1413
  %v1424 = vpop.permute.xlu0 %1423
  %1427 = vset.pattern.permute.xlu0 4
  %1428 = vperm.xlu0 %1427, %v1414
  %v1429 = vpop.permute.xlu0 %1428
  %1432 = vset.pattern.permute.xlu0 4
  %1433 = vperm.xlu0 %1432, %v1415
  %v1434 = vpop.permute.xlu0 %1433
  %v1436 = vmul.f32 %v1419, %v76
  %v1437 = vmul.f32 %v1424, %v76
  %v1438 = vmul.f32 %v1429, %v76
  %v1439 = vmul.f32 %v1434, %v76
  %v1444 = vrot.slane %v1436, 7
  %v1445 = vrot.slane %v1437, 7
  %v1446 = vrot.slane %v1438, 7
  %v1447 = vrot.slane %v1439, 7
  %v1452 = vadd.f32 %v72, %v1444
  %v1453 = vadd.f32 %v73, %v1445
  %v1454 = vadd.f32 %v74, %v1446
  %v1455 = vadd.f32 %v75, %v1447
  %1456 = vset.pattern.permute.xlu0 5
  %1457 = vperm.xlu0 %1456, %v1412
  %v1458 = vpop.permute.xlu0 %1457
  %1460 = vset.pattern.permute.xlu0 5
  %1461 = vperm.xlu0 %1460, %v1413
  %v1462 = vpop.permute.xlu0 %1461
  %1464 = vset.pattern.permute.xlu0 5
  %1465 = vperm.xlu0 %1464, %v1414
  %v1466 = vpop.permute.xlu0 %1465
  %1468 = vset.pattern.permute.xlu0 5
  %1469 = vperm.xlu0 %1468, %v1415
  %v1470 = vpop.permute.xlu0 %1469
  %v1472 = vmul.f32 %v1458, %v82
  %v1473 = vmul.f32 %v1462, %v82
  %v1474 = vmul.f32 %v1466, %v82
  %v1475 = vmul.f32 %v1470, %v82
  %v1480 = vrot.slane %v1472, 7
  %v1481 = vrot.slane %v1473, 7
  %v1482 = vrot.slane %v1474, 7
  %v1483 = vrot.slane %v1475, 7
  %v1488 = vadd.f32 %v1452, %v1480
  %v1489 = vadd.f32 %v1453, %v1481
  %v1490 = vadd.f32 %v1454, %v1482
  %v1491 = vadd.f32 %v1455, %v1483
  %v1492 = vxor.u32 %v1488, 2147483648
  %v1493 = vxor.u32 %v1489, 2147483648
  %v1494 = vxor.u32 %v1490, 2147483648
  %v1495 = vxor.u32 %v1491, 2147483648
  %v1496 = vmul.f32 %v1492, 1.442695
  %v1497 = vpow.pop %v1496
  %v1498 = vmul.f32 %v1493, 1.442695
  %v1499 = vpow.pop %v1498
  %v1500 = vmul.f32 %v1494, 1.442695
  %v1501 = vpow.pop %v1500
  %v1502 = vmul.f32 %v1495, 1.442695
  %v1503 = vpow.pop %v1502
  %v1504 = vadd.f32 %v1497, 1.0
  %v1505 = vadd.f32 %v1499, 1.0
  %v1506 = vadd.f32 %v1501, 1.0
  %v1507 = vadd.f32 %v1503, 1.0
  %v1508 = vrcp.pop %v1504
  %v1509 = vmul.f32 %v1504, %v1508
  %v1510 = vsub.f32 1.0, %v1509
  %v1511 = vmul.f32 %v1508, %v1510
  %v1512 = vadd.f32 %v1508, %v1511
  %vm1513 = vweird.f32 %v1504
  %vm1514 = vweird.f32 %v1508
  %vm1515 = vmor %vm1513, %vm1514
  %v1516 = vsel %vm1515, %v1508, %v1512
  %v1517 = vand.u32 2147483647, %v1504
  %vm1518 = vcmp.eq.f32.partialorder %v1517, 8.507059e+37
  %v1519 = vand.u32 %v1504, 2147483648
  %v1520 = vor.u32 1.1754944e-38, %v1519
  %v1521 = vsel %vm1518, %v1520, %v1516
  %v1522 = vmul.f32 1.0, %v1521
  %v1523 = vrcp.pop %v1505
  %v1524 = vmul.f32 %v1505, %v1523
  %v1525 = vsub.f32 1.0, %v1524
  %v1526 = vmul.f32 %v1523, %v1525
  %v1527 = vadd.f32 %v1523, %v1526
  %vm1528 = vweird.f32 %v1505
  %vm1529 = vweird.f32 %v1523
  %vm1530 = vmor %vm1528, %vm1529
  %v1531 = vsel %vm1530, %v1523, %v1527
  %v1532 = vand.u32 2147483647, %v1505
  %vm1533 = vcmp.eq.f32.partialorder %v1532, 8.507059e+37
  %v1534 = vand.u32 %v1505, 2147483648
  %v1535 = vor.u32 1.1754944e-38, %v1534
  %v1536 = vsel %vm1533, %v1535, %v1531
  %v1537 = vmul.f32 1.0, %v1536
  %v1538 = vrcp.pop %v1506
  %v1539 = vmul.f32 %v1506, %v1538
  %v1540 = vsub.f32 1.0, %v1539
  %v1541 = vmul.f32 %v1538, %v1540
  %v1542 = vadd.f32 %v1538, %v1541
  %vm1543 = vweird.f32 %v1506
  %vm1544 = vweird.f32 %v1538
  %vm1545 = vmor %vm1543, %vm1544
  %v1546 = vsel %vm1545, %v1538, %v1542
  %v1547 = vand.u32 2147483647, %v1506
  %vm1548 = vcmp.eq.f32.partialorder %v1547, 8.507059e+37
  %v1549 = vand.u32 %v1506, 2147483648
  %v1550 = vor.u32 1.1754944e-38, %v1549
  %v1551 = vsel %vm1548, %v1550, %v1546
  %v1552 = vmul.f32 1.0, %v1551
  %v1553 = vrcp.pop %v1507
  %v1554 = vmul.f32 %v1507, %v1553
  %v1555 = vsub.f32 1.0, %v1554
  %v1556 = vmul.f32 %v1553, %v1555
  %v1557 = vadd.f32 %v1553, %v1556
  %vm1558 = vweird.f32 %v1507
  %vm1559 = vweird.f32 %v1553
  %vm1560 = vmor %vm1558, %vm1559
  %v1561 = vsel %vm1560, %v1553, %v1557
  %v1562 = vand.u32 2147483647, %v1507
  %vm1563 = vcmp.eq.f32.partialorder %v1562, 8.507059e+37
  %v1564 = vand.u32 %v1507, 2147483648
  %v1565 = vor.u32 1.1754944e-38, %v1564
  %v1566 = vsel %vm1563, %v1565, %v1561
  %v1567 = vmul.f32 1.0, %v1566
  %v1568 = vtanh.pop %v1488
  %v1569 = vtanh.pop %v1489
  %v1570 = vtanh.pop %v1490
  %v1571 = vtanh.pop %v1491
  %v1576 = vrot.slane %v1388, 7
  %v1577 = vrot.slane %v1389, 7
  %v1578 = vrot.slane %v1390, 7
  %v1579 = vrot.slane %v1391, 7
  %v1584 = vmul.f32 %v1522, %v1576
  %v1585 = vmul.f32 %v1537, %v1577
  %v1586 = vmul.f32 %v1552, %v1578
  %v1587 = vmul.f32 %v1567, %v1579
  %1592 = vrot.lane.b32.xlu0 %v1568, 122
  %v1593 = vpop.permute.xlu0 %1592
  %1594 = vrot.lane.b32.xlu0 %v1569, 122
  %v1595 = vpop.permute.xlu0 %1594
  %1596 = vrot.lane.b32.xlu0 %v1570, 122
  %v1597 = vpop.permute.xlu0 %1596
  %1598 = vrot.lane.b32.xlu0 %v1571, 122
  %v1599 = vpop.permute.xlu0 %1598
  %v1604 = vmul.f32 %v1522, %v1593
  %v1605 = vmul.f32 %v1537, %v1595
  %v1606 = vmul.f32 %v1552, %v1597
  %v1607 = vmul.f32 %v1567, %v1599
  %1612 = vrot.lane.b32.xlu0 %v1604, 2
  %v1613 = vpop.permute.xlu0 %1612
  %1614 = vrot.lane.b32.xlu0 %v1605, 2
  %v1615 = vpop.permute.xlu0 %1614
  %1616 = vrot.lane.b32.xlu0 %v1606, 2
  %v1617 = vpop.permute.xlu0 %1616
  %1618 = vrot.lane.b32.xlu0 %v1607, 2
  %v1619 = vpop.permute.xlu0 %1618
  %v1624 = vadd.f32 %v1584, %v1613
  %v1625 = vadd.f32 %v1585, %v1615
  %v1626 = vadd.f32 %v1586, %v1617
  %v1627 = vadd.f32 %v1587, %v1619
  %v1628 = vtanh.pop %v1624
  %v1629 = vtanh.pop %v1625
  %v1630 = vtanh.pop %v1626
  %v1631 = vtanh.pop %v1627
  %1636 = vrot.lane.b32.xlu0 %v1628, 2
  %v1637 = vpop.permute.xlu0 %1636
  %1638 = vrot.lane.b32.xlu0 %v1629, 2
  %v1639 = vpop.permute.xlu0 %1638
  %1640 = vrot.lane.b32.xlu0 %v1630, 2
  %v1641 = vpop.permute.xlu0 %1640
  %1642 = vrot.lane.b32.xlu0 %v1631, 2
  %v1643 = vpop.permute.xlu0 %1642
  %v1648 = vmul.f32 %v1522, %v1637
  %v1649 = vmul.f32 %v1537, %v1639
  %v1650 = vmul.f32 %v1552, %v1641
  %v1651 = vmul.f32 %v1567, %v1643
  %1653 = vset.pattern.permute.xlu0 4
  %1654 = vperm.xlu0 %1653, %v1648
  %v1655 = vpop.permute.xlu0 %1654
  %1658 = vset.pattern.permute.xlu0 4
  %1659 = vperm.xlu0 %1658, %v1649
  %v1660 = vpop.permute.xlu0 %1659
  %1663 = vset.pattern.permute.xlu0 4
  %1664 = vperm.xlu0 %1663, %v1650
  %v1665 = vpop.permute.xlu0 %1664
  %1668 = vset.pattern.permute.xlu0 4
  %1669 = vperm.xlu0 %1668, %v1651
  %v1670 = vpop.permute.xlu0 %1669
  %v1672 = vmul.f32 %v1655, %v76
  %v1673 = vmul.f32 %v1660, %v76
  %v1674 = vmul.f32 %v1665, %v76
  %v1675 = vmul.f32 %v1670, %v76
  %v1680 = vrot.slane %v1672, 7
  %v1681 = vrot.slane %v1673, 7
  %v1682 = vrot.slane %v1674, 7
  %v1683 = vrot.slane %v1675, 7
  %v1688 = vadd.f32 %v72, %v1680
  %v1689 = vadd.f32 %v73, %v1681
  %v1690 = vadd.f32 %v74, %v1682
  %v1691 = vadd.f32 %v75, %v1683
  %1692 = vset.pattern.permute.xlu0 5
  %1693 = vperm.xlu0 %1692, %v1648
  %v1694 = vpop.permute.xlu0 %1693
  %1696 = vset.pattern.permute.xlu0 5
  %1697 = vperm.xlu0 %1696, %v1649
  %v1698 = vpop.permute.xlu0 %1697
  %1700 = vset.pattern.permute.xlu0 5
  %1701 = vperm.xlu0 %1700, %v1650
  %v1702 = vpop.permute.xlu0 %1701
  %1704 = vset.pattern.permute.xlu0 5
  %1705 = vperm.xlu0 %1704, %v1651
  %v1706 = vpop.permute.xlu0 %1705
  %v1708 = vmul.f32 %v1694, %v82
  %v1709 = vmul.f32 %v1698, %v82
  %v1710 = vmul.f32 %v1702, %v82
  %v1711 = vmul.f32 %v1706, %v82
  %v1716 = vrot.slane %v1708, 7
  %v1717 = vrot.slane %v1709, 7
  %v1718 = vrot.slane %v1710, 7
  %v1719 = vrot.slane %v1711, 7
  %v1724 = vadd.f32 %v1688, %v1716
  %v1725 = vadd.f32 %v1689, %v1717
  %v1726 = vadd.f32 %v1690, %v1718
  %v1727 = vadd.f32 %v1691, %v1719
  %v1728 = vxor.u32 %v1724, 2147483648
  %v1729 = vxor.u32 %v1725, 2147483648
  %v1730 = vxor.u32 %v1726, 2147483648
  %v1731 = vxor.u32 %v1727, 2147483648
  %v1732 = vmul.f32 %v1728, 1.442695
  %v1733 = vpow.pop %v1732
  %v1734 = vmul.f32 %v1729, 1.442695
  %v1735 = vpow.pop %v1734
  %v1736 = vmul.f32 %v1730, 1.442695
  %v1737 = vpow.pop %v1736
  %v1738 = vmul.f32 %v1731, 1.442695
  %v1739 = vpow.pop %v1738
  %v1740 = vadd.f32 %v1733, 1.0
  %v1741 = vadd.f32 %v1735, 1.0
  %v1742 = vadd.f32 %v1737, 1.0
  %v1743 = vadd.f32 %v1739, 1.0
  %v1744 = vrcp.pop %v1740
  %v1745 = vmul.f32 %v1740, %v1744
  %v1746 = vsub.f32 1.0, %v1745
  %v1747 = vmul.f32 %v1744, %v1746
  %v1748 = vadd.f32 %v1744, %v1747
  %vm1749 = vweird.f32 %v1740
  %vm1750 = vweird.f32 %v1744
  %vm1751 = vmor %vm1749, %vm1750
  %v1752 = vsel %vm1751, %v1744, %v1748
  %v1753 = vand.u32 2147483647, %v1740
  %vm1754 = vcmp.eq.f32.partialorder %v1753, 8.507059e+37
  %v1755 = vand.u32 %v1740, 2147483648
  %v1756 = vor.u32 1.1754944e-38, %v1755
  %v1757 = vsel %vm1754, %v1756, %v1752
  %v1758 = vmul.f32 1.0, %v1757
  %v1759 = vrcp.pop %v1741
  %v1760 = vmul.f32 %v1741, %v1759
  %v1761 = vsub.f32 1.0, %v1760
  %v1762 = vmul.f32 %v1759, %v1761
  %v1763 = vadd.f32 %v1759, %v1762
  %vm1764 = vweird.f32 %v1741
  %vm1765 = vweird.f32 %v1759
  %vm1766 = vmor %vm1764, %vm1765
  %v1767 = vsel %vm1766, %v1759, %v1763
  %v1768 = vand.u32 2147483647, %v1741
  %vm1769 = vcmp.eq.f32.partialorder %v1768, 8.507059e+37
  %v1770 = vand.u32 %v1741, 2147483648
  %v1771 = vor.u32 1.1754944e-38, %v1770
  %v1772 = vsel %vm1769, %v1771, %v1767
  %v1773 = vmul.f32 1.0, %v1772
  %v1774 = vrcp.pop %v1742
  %v1775 = vmul.f32 %v1742, %v1774
  %v1776 = vsub.f32 1.0, %v1775
  %v1777 = vmul.f32 %v1774, %v1776
  %v1778 = vadd.f32 %v1774, %v1777
  %vm1779 = vweird.f32 %v1742
  %vm1780 = vweird.f32 %v1774
  %vm1781 = vmor %vm1779, %vm1780
  %v1782 = vsel %vm1781, %v1774, %v1778
  %v1783 = vand.u32 2147483647, %v1742
  %vm1784 = vcmp.eq.f32.partialorder %v1783, 8.507059e+37
  %v1785 = vand.u32 %v1742, 2147483648
  %v1786 = vor.u32 1.1754944e-38, %v1785
  %v1787 = vsel %vm1784, %v1786, %v1782
  %v1788 = vmul.f32 1.0, %v1787
  %v1789 = vrcp.pop %v1743
  %v1790 = vmul.f32 %v1743, %v1789
  %v1791 = vsub.f32 1.0, %v1790
  %v1792 = vmul.f32 %v1789, %v1791
  %v1793 = vadd.f32 %v1789, %v1792
  %vm1794 = vweird.f32 %v1743
  %vm1795 = vweird.f32 %v1789
  %vm1796 = vmor %vm1794, %vm1795
  %v1797 = vsel %vm1796, %v1789, %v1793
  %v1798 = vand.u32 2147483647, %v1743
  %vm1799 = vcmp.eq.f32.partialorder %v1798, 8.507059e+37
  %v1800 = vand.u32 %v1743, 2147483648
  %v1801 = vor.u32 1.1754944e-38, %v1800
  %v1802 = vsel %vm1799, %v1801, %v1797
  %v1803 = vmul.f32 1.0, %v1802
  %v1804 = vtanh.pop %v1724
  %v1805 = vtanh.pop %v1725
  %v1806 = vtanh.pop %v1726
  %v1807 = vtanh.pop %v1727
  %v1812 = vrot.slane %v1624, 7
  %v1813 = vrot.slane %v1625, 7
  %v1814 = vrot.slane %v1626, 7
  %v1815 = vrot.slane %v1627, 7
  %v1820 = vmul.f32 %v1758, %v1812
  %v1821 = vmul.f32 %v1773, %v1813
  %v1822 = vmul.f32 %v1788, %v1814
  %v1823 = vmul.f32 %v1803, %v1815
  %1828 = vrot.lane.b32.xlu0 %v1804, 122
  %v1829 = vpop.permute.xlu0 %1828
  %1830 = vrot.lane.b32.xlu0 %v1805, 122
  %v1831 = vpop.permute.xlu0 %1830
  %1832 = vrot.lane.b32.xlu0 %v1806, 122
  %v1833 = vpop.permute.xlu0 %1832
  %1834 = vrot.lane.b32.xlu0 %v1807, 122
  %v1835 = vpop.permute.xlu0 %1834
  %v1840 = vmul.f32 %v1758, %v1829
  %v1841 = vmul.f32 %v1773, %v1831
  %v1842 = vmul.f32 %v1788, %v1833
  %v1843 = vmul.f32 %v1803, %v1835
  %1848 = vrot.lane.b32.xlu0 %v1840, 2
  %v1849 = vpop.permute.xlu0 %1848
  %1850 = vrot.lane.b32.xlu0 %v1841, 2
  %v1851 = vpop.permute.xlu0 %1850
  %1852 = vrot.lane.b32.xlu0 %v1842, 2
  %v1853 = vpop.permute.xlu0 %1852
  %1854 = vrot.lane.b32.xlu0 %v1843, 2
  %v1855 = vpop.permute.xlu0 %1854
  %v1860 = vadd.f32 %v1820, %v1849
  %v1861 = vadd.f32 %v1821, %v1851
  %v1862 = vadd.f32 %v1822, %v1853
  %v1863 = vadd.f32 %v1823, %v1855
  %v1864 = vtanh.pop %v1860
  %v1865 = vtanh.pop %v1861
  %v1866 = vtanh.pop %v1862
  %v1867 = vtanh.pop %v1863
  %1872 = vrot.lane.b32.xlu0 %v1864, 2
  %v1873 = vpop.permute.xlu0 %1872
  %1874 = vrot.lane.b32.xlu0 %v1865, 2
  %v1875 = vpop.permute.xlu0 %1874
  %1876 = vrot.lane.b32.xlu0 %v1866, 2
  %v1877 = vpop.permute.xlu0 %1876
  %1878 = vrot.lane.b32.xlu0 %v1867, 2
  %v1879 = vpop.permute.xlu0 %1878
  %v1884 = vmul.f32 %v1758, %v1873
  %v1885 = vmul.f32 %v1773, %v1875
  %v1886 = vmul.f32 %v1788, %v1877
  %v1887 = vmul.f32 %v1803, %v1879
  %v1888 = vmax.f32 %v1884, 0.0
  %v1889 = vmax.f32 %v1885, 0.0
  %v1890 = vmax.f32 %v1886, 0.0
  %v1891 = vmax.f32 %v1887, 0.0
  %v1892 = vld [vmem:[%s5] sm:$0x7]
  %v1893 = vld [vmem:[%s4] ss:$2 sm:$0x7]
  %1895 = vset.pattern.permute.xlu0 4
  %1896 = vperm.xlu0 %1895, %v1888
  %v1897 = vpop.permute.xlu0 %1896
  %1900 = vset.pattern.permute.xlu0 4
  %1901 = vperm.xlu0 %1900, %v1889
  %v1902 = vpop.permute.xlu0 %1901
  %1905 = vset.pattern.permute.xlu0 4
  %1906 = vperm.xlu0 %1905, %v1890
  %v1907 = vpop.permute.xlu0 %1906
  %1910 = vset.pattern.permute.xlu0 4
  %1911 = vperm.xlu0 %1910, %v1891
  %v1912 = vpop.permute.xlu0 %1911
  %v1915 = vperm.slane %v1893, 0
  %v1916 = vperm.slane %v1893, 1
  %v1917 = vperm.slane %v1893, 2
  %v1921 = vmul.f32 %v1897, %v1915
  %v1922 = vmul.f32 %v1897, %v1916
  %v1923 = vmul.f32 %v1897, %v1917
  %v1924 = vmul.f32 %v1902, %v1915
  %v1925 = vmul.f32 %v1902, %v1916
  %v1926 = vmul.f32 %v1902, %v1917
  %v1927 = vmul.f32 %v1907, %v1915
  %v1928 = vmul.f32 %v1907, %v1916
  %v1929 = vmul.f32 %v1907, %v1917
  %v1930 = vmul.f32 %v1912, %v1915
  %v1931 = vmul.f32 %v1912, %v1916
  %v1932 = vmul.f32 %v1912, %v1917
  %v1934 = vperm.slane %v1892, 0
  %v1935 = vperm.slane %v1892, 1
  %v1936 = vperm.slane %v1892, 2
  %v1952 = vrot.slane %v1921, 7
  %v1953 = vrot.slane %v1924, 6
  %vm1954 = vcmask 1041409
  %v1955 = vsel %vm1954, %v1953, %v1952
  %v1956 = vrot.slane %v1927, 5
  %vm1957 = vcmask 1042434
  %v1958 = vsel %vm1957, %v1956, %v1955
  %v1959 = vrot.slane %v1930, 4
  %vm1960 = vcmask 1043459
  %v1961 = vsel %vm1960, %v1959, %v1958
  %v1962 = vrot.slane %v1922, 7
  %v1963 = vrot.slane %v1925, 6
  %v1964 = vsel %vm1954, %v1963, %v1962
  %v1965 = vrot.slane %v1928, 5
  %v1966 = vsel %vm1957, %v1965, %v1964
  %v1967 = vrot.slane %v1931, 4
  %v1968 = vsel %vm1960, %v1967, %v1966
  %v1969 = vrot.slane %v1923, 7
  %v1970 = vrot.slane %v1926, 6
  %v1971 = vsel %vm1954, %v1970, %v1969
  %v1972 = vrot.slane %v1929, 5
  %v1973 = vsel %vm1957, %v1972, %v1971
  %v1974 = vrot.slane %v1932, 4
  %v1975 = vsel %vm1960, %v1974, %v1973
  %v1979 = vadd.f32 %v1934, %v1961
  %v1980 = vadd.f32 %v1935, %v1968
  %v1981 = vadd.f32 %v1936, %v1975
  %s1982 = scalar_lea.vmem %s4, 1
  %v1983 = vld [vmem:[%s1982] ss:$2 sm:$0x7]
  %1984 = vset.pattern.permute.xlu0 5
  %1985 = vperm.xlu0 %1984, %v1888
  %v1986 = vpop.permute.xlu0 %1985
  %1988 = vset.pattern.permute.xlu0 5
  %1989 = vperm.xlu0 %1988, %v1889
  %v1990 = vpop.permute.xlu0 %1989
  %1992 = vset.pattern.permute.xlu0 5
  %1993 = vperm.xlu0 %1992, %v1890
  %v1994 = vpop.permute.xlu0 %1993
  %1996 = vset.pattern.permute.xlu0 5
  %1997 = vperm.xlu0 %1996, %v1891
  %v1998 = vpop.permute.xlu0 %1997
  %v2001 = vperm.slane %v1983, 0
  %v2002 = vperm.slane %v1983, 1
  %v2003 = vperm.slane %v1983, 2
  %v2007 = vmul.f32 %v1986, %v2001
  %v2008 = vmul.f32 %v1986, %v2002
  %v2009 = vmul.f32 %v1986, %v2003
  %v2010 = vmul.f32 %v1990, %v2001
  %v2011 = vmul.f32 %v1990, %v2002
  %v2012 = vmul.f32 %v1990, %v2003
  %v2013 = vmul.f32 %v1994, %v2001
  %v2014 = vmul.f32 %v1994, %v2002
  %v2015 = vmul.f32 %v1994, %v2003
  %v2016 = vmul.f32 %v1998, %v2001
  %v2017 = vmul.f32 %v1998, %v2002
  %v2018 = vmul.f32 %v1998, %v2003
  %v2031 = vrot.slane %v2007, 7
  %v2032 = vrot.slane %v2010, 6
  %v2033 = vsel %vm1954, %v2032, %v2031
  %v2034 = vrot.slane %v2013, 5
  %v2035 = vsel %vm1957, %v2034, %v2033
  %v2036 = vrot.slane %v2016, 4
  %v2037 = vsel %vm1960, %v2036, %v2035
  %v2038 = vrot.slane %v2008, 7
  %v2039 = vrot.slane %v2011, 6
  %v2040 = vsel %vm1954, %v2039, %v2038
  %v2041 = vrot.slane %v2014, 5
  %v2042 = vsel %vm1957, %v2041, %v2040
  %v2043 = vrot.slane %v2017, 4
  %v2044 = vsel %vm1960, %v2043, %v2042
  %v2045 = vrot.slane %v2009, 7
  %v2046 = vrot.slane %v2012, 6
  %v2047 = vsel %vm1954, %v2046, %v2045
  %v2048 = vrot.slane %v2015, 5
  %v2049 = vsel %vm1957, %v2048, %v2047
  %v2050 = vrot.slane %v2018, 4
  %v2051 = vsel %vm1960, %v2050, %v2049
  %v2055 = vadd.f32 %v1979, %v2037
  %v2056 = vadd.f32 %v1980, %v2044
  %v2057 = vadd.f32 %v1981, %v2051
  %v2058 = vmax.f32 %v2055, 0.0
  %v2059 = vmax.f32 %v2056, 0.0
  %v2060 = vmax.f32 %v2057, 0.0
  %v2061 = vld [vmem:[%s6] sm:$0xff]
  %v2062 = vld [vmem:[%s6 + $0x8] sm:$0xff]
  %v2063 = vld [vmem:[%s6 + $0x10] sm:$0xff]
  %v2064 = vld [vmem:[%s6 + $0x18] sm:$0xff]
  %v2065 = vld [vmem:[%s6 + $0x20] sm:$0xff]
  %v2066 = vld [vmem:[%s6 + $0x28] sm:$0xff]
  %v2067 = vld [vmem:[%s6 + $0x30] sm:$0xff]
  %v2068 = vld [vmem:[%s6 + $0x38] sm:$0xff]
  %v2069 = vld [vmem:[%s6 + $0x40] sm:$0xff]
  %v2070 = vld [vmem:[%s6 + $0x48] sm:$0xff]
  %v2071 = vld [vmem:[%s6 + $0x50] sm:$0xff]
  %v2072 = vld [vmem:[%s6 + $0x58] sm:$0xff]
  %v2073 = vld [vmem:[%s6 + $0x60] sm:$0xff]
  %v2074 = vld [vmem:[%s6 + $0x68] sm:$0xff]
  %v2075 = vld [vmem:[%s6 + $0x70] sm:$0xff]
  %v2076 = vld [vmem:[%s6 + $0x78] sm:$0xff]
  %v2077 = vld [vmem:[%s6 + $0x80] sm:$0xff]
  %v2078 = vld [vmem:[%s6 + $0x88] sm:$0xff]
  %v2079 = vld [vmem:[%s6 + $0x90] sm:$0xff]
  %v2080 = vld [vmem:[%s6 + $0x98] sm:$0xff]
  %v2081 = vld [vmem:[%s6 + $0xa0] sm:$0xff]
  %v2082 = vld [vmem:[%s6 + $0xa8] sm:$0xff]
  %v2083 = vld [vmem:[%s6 + $0xb0] sm:$0xff]
  %v2084 = vld [vmem:[%s6 + $0xb8] sm:$0xff]
  %v2085 = vld [vmem:[%s6 + $0xc0] sm:$0xff]
  %v2086 = vld [vmem:[%s6 + $0xc8] sm:$0xff]
  %v2087 = vld [vmem:[%s6 + $0xd0] sm:$0xff]
  %v2088 = vld [vmem:[%s6 + $0xd8] sm:$0xff]
  %v2089 = vld [vmem:[%s6 + $0xe0] sm:$0xff]
  %v2090 = vld [vmem:[%s6 + $0xe8] sm:$0xff]
  %v2091 = vld [vmem:[%s6 + $0xf0] sm:$0xff]
  %v2092 = vld [vmem:[%s6 + $0xf8] sm:$0xff]
  %v2093 = vld [vmem:[%s6 + $0x100] sm:$0xff]
  %v2094 = vld [vmem:[%s6 + $0x108] sm:$0xff]
  %v2095 = vld [vmem:[%s6 + $0x110] sm:$0xff]
  %v2096 = vld [vmem:[%s6 + $0x118] sm:$0xff]
  %v2097 = vld [vmem:[%s6 + $0x120] sm:$0xff]
  %v2098 = vld [vmem:[%s6 + $0x128] sm:$0xf]
  %v2099 = vld [vmem:[%s7] sm:$0x1]
  %v2101 = vperm.slane %v2099, 0
  %vm2103 = vcmask 359424
  %v2105 = vsel %vm2103, %v2060, 0
  %vm2107 = vcmask 1043456
  %v2109 = vsel %vm2107, %v2098, 0
  %2111 = vmatpush.msra.mxu0 %v2076
  %2112 = vmatpush.msra.mxu0 %v2075
  %2113 = vmatpush.msra.mxu0 %v2074
  %2114 = vmatpush.msra.mxu0 %v2073
  %2115 = vmatpush.msra.mxu0 %v2072
  %2116 = vmatpush.msra.mxu0 %v2071
  %2117 = vmatpush.msra.mxu0 %v2070
  %2118 = vmatpush.msra.mxu0 %v2069
  %2119 = vmatpush.msra.mxu0 %v2068
  %2120 = vmatpush.msra.mxu0 %v2067
  %2121 = vmatpush.msra.mxu0 %v2066
  %2122 = vmatpush.msra.mxu0 %v2065
  %2123 = vmatpush.msra.mxu0 %v2064
  %2124 = vmatpush.msra.mxu0 %v2063
  %2125 = vmatpush.msra.mxu0 %v2062
  %2126 = vmatpush.msra.mxu0 %v2061
  %2127 = vmatmul.f32.gmra.mxu0 %v2058
  %v2128 = vpop.f32.mrf.mxu0
  %v2129 = vadd.f32 %v2101, %v2128
  %2130 = vdwg.mxu0
  %2131 = vmatpush.msra.mxu0 %v2092
  %2132 = vmatpush.msra.mxu0 %v2091
  %2133 = vmatpush.msra.mxu0 %v2090
  %2134 = vmatpush.msra.mxu0 %v2089
  %2135 = vmatpush.msra.mxu0 %v2088
  %2136 = vmatpush.msra.mxu0 %v2087
  %2137 = vmatpush.msra.mxu0 %v2086
  %2138 = vmatpush.msra.mxu0 %v2085
  %2139 = vmatpush.msra.mxu0 %v2084
  %2140 = vmatpush.msra.mxu0 %v2083
  %2141 = vmatpush.msra.mxu0 %v2082
  %2142 = vmatpush.msra.mxu0 %v2081
  %2143 = vmatpush.msra.mxu0 %v2080
  %2144 = vmatpush.msra.mxu0 %v2079
  %2145 = vmatpush.msra.mxu0 %v2078
  %2146 = vmatpush.msra.mxu0 %v2077
  %2147 = vmatmul.f32.gmra.mxu0 %v2059
  %v2148 = vpop.f32.mrf.mxu0
  %v2149 = vadd.f32 %v2129, %v2148
  %2150 = vdwg.mxu0
  %2151 = vmatpush.msra.mxu0 0.0
  %2152 = vmatpush.msra.mxu0 0.0
  %2153 = vmatpush.msra.mxu0 0.0
  %2154 = vmatpush.msra.mxu0 0.0
  %2155 = vmatpush.msra.mxu0 0.0
  %2156 = vmatpush.msra.mxu0 0.0
  %2157 = vmatpush.msra.mxu0 0.0
  %2158 = vmatpush.msra.mxu0 0.0
  %2159 = vmatpush.msra.mxu0 0.0
  %2160 = vmatpush.msra.mxu0 0.0
  %2161 = vmatpush.msra.mxu0 %v2109
  %2162 = vmatpush.msra.mxu0 %v2097
  %2163 = vmatpush.msra.mxu0 %v2096
  %2164 = vmatpush.msra.mxu0 %v2095
  %2165 = vmatpush.msra.mxu0 %v2094
  %2166 = vmatpush.msra.mxu0 %v2093
  %2167 = vmatmul.f32.gmra.mxu0 %v2105
  %v2168 = vpop.f32.mrf.mxu0
  %v2169 = vadd.f32 %v2149, %v2168
  %2170 = vdwg.mxu0
  %v2171 = vmax.f32 %v2169, 0.0
  %v2172 = vld [vmem:[%s8] sm:$0x1]
  %v2173 = vperm.slane %v2172, 0
  %v2174 = vmul.f32 %v2171, %v2173
  %vm2175 = vcmask 404480
  %v2176 = vsel %vm2175, %v2174, 0.0
  %2177 = vadd.xlane.f32.xlu0 %v2176
  %v2178 = vpop.xlane.xlu0 %2177
  %v2179 = vld [vmem:[%s9] sm:$0x1]
  %v2181 = vperm.slane %v2179, 0
  %v2183 = vadd.f32 %v2178, %v2181
  %v2184 = vld [vmem:[%s8 + $0x1] sm:$0x1]
  %v2185 = vperm.slane %v2184, 0
  %v2186 = vmul.f32 %v2171, %v2185
  %v2187 = vsel %vm2175, %v2186, 0.0
  %2188 = vadd.xlane.f32.xlu0 %v2187
  %v2189 = vpop.xlane.xlu0 %2188
  %v2190 = vadd.f32 %v2189, %v2181
  %2192 = vrot.lane.b32.xlu0 %v2190, 127
  %v2193 = vpop.permute.xlu0 %2192
  %v2195 = vmax.f32 %v2183, %v2193
  %v2196 = vsub.f32 %v2183, %v2195
  %v2197 = vmul.f32 %v2196, 1.442695
  %v2198 = vpow.pop %v2197
  %2200 = vrot.lane.b32.xlu0 %v2195, 1
  %v2201 = vpop.permute.xlu0 %2200
  %v2203 = vsub.f32 %v2190, %v2201
  %v2204 = vmul.f32 %v2203, 1.442695
  %v2205 = vpow.pop %v2204
  %2207 = vrot.lane.b32.xlu0 %v2205, 127
  %v2208 = vpop.permute.xlu0 %2207
  %v2210 = vadd.f32 %v2198, %v2208
  %v2211 = vrcp.pop %v2210
  %v2212 = vmul.f32 %v2198, %v2211
  %vm2213 = vcmask 3072
  %2214 = vst.msk [vmem:[%s10] sm:$0xf] %vm2213, %v2212
  %2216 = vrot.lane.b32.xlu0 %v2211, 1
  %v2217 = vpop.permute.xlu0 %2216
  %v2219 = vmul.f32 %v2205, %v2217
  %vm2220 = vcmask 11272
  %2221 = vst.msk [vmem:[%s10] sm:$0xf] %vm2220, %v2219
  // Predicated region
  $region42: #{lstm_model_forward.1} parent=0 // pred_check
    _
  $region43: #{lstm_model_forward.1} parent=0 // pred_check_branch
    %2223 = sbr.rel (0) target = $region45
  $region44: #{lstm_model_forward.1} parent=0 // pred_region
    _
  $region45: #{lstm_model_forward.1} parent=0 // pred_fallthru
    _
  // Predicated region
  $region46: #{lstm_model_forward.1} parent=0 // pred_check
    _
  $region47: #{lstm_model_forward.1} parent=0 // pred_check_branch
    %2225 = sbr.rel (0) target = $region49
  $region48: #{lstm_model_forward.1} parent=0 // pred_region
    _
  $region49: #{lstm_model_forward.1} parent=0 // pred_fallthru
    _

</llo_original>
